<compile_context>
chip_gen: v5e
topology: v5e:2x2
jax: 0.10.0
libtpu: 0.0.40
codegen_flags: <defaults>
</compile_context>

<pallas_src>
import functools
import math

import jax
import jax.numpy as jnp
from jax.experimental import pallas as pl
from jax.experimental.pallas import tpu as pltpu


# ----------------------------------------------------------------------------
# small helpers
# ----------------------------------------------------------------------------
def _round_up(n, m):
    return ((n + m - 1) // m) * m


def _nbytes(a):
    return int(math.prod(a.shape)) * a.dtype.itemsize


def _probe_buffered_support():
    """Detect pl.Buffered / pipeline_mode support once at import time.

    No silent fallback at use sites: when unsupported, weights are budgeted as
    double-buffered in the VMEM limit so we never over-commit v7x's 64 MiB.
    """
    try:
        pl.BlockSpec((8, 128), lambda i: (0, 0), pipeline_mode=pl.Buffered(1))
        return True
    except Exception:
        return False


_HAS_BUFFERED = _probe_buffered_support()


def _hw_config():
    """Per-generation tiling / dtype / VMEM decisions."""
    kind = ""
    try:
        kind = (jax.devices()[0].device_kind or "").lower()
    except Exception:
        kind = ""
    old_gen = any(t in kind for t in ("v2", "v3", "v4", "v5"))
    vmem_cap = None
    try:
        vmem_cap = int(pltpu.get_tpu_info().vmem_capacity_bytes)
    except Exception:
        vmem_cap = None
    if not vmem_cap or vmem_cap <= 0:
        # Conservative fallbacks: v7x has 64 MiB/TC, older parts 128 MiB.
        vmem_cap = 64 * 2**20 if ("v7" in kind or not kind) else 128 * 2**20
    small_vmem = vmem_cap < 96 * 2**20            # v7x-class budget
    return {
        "vmem_cap": vmem_cap,
        # 256 fills the 256-row MXU on v6e/v7x; 128 matches v5e's 128-row MXU.
        "seq_tile": 128 if old_gen else 256,
        # bf16 exp doubles EUP throughput on v6e/v7x; v5e EUP has no bf16 path.
        "exp_dtype": jnp.float32 if old_gen else jnp.bfloat16,
        # 64 MiB parts: split attention / FFN into two calls and single-buffer
        # the full-sequence K/V; 128 MiB parts keep the fused kernel.
        "split_ffn": small_vmem,
        "kv_buffers": 1 if small_vmem else 2,
    }


def _vmem_limit(hw, est_bytes):
    cap = int(0.8 * hw["vmem_cap"])
    return int(min(cap, max(32 * 2**20, int(1.3 * est_bytes))))


def _weight_spec(w):
    """Full-array BlockSpec for a weight; single-buffered when supported.

    The index_map is constant across the whole grid, so one VMEM buffer
    suffices (halves resident weight VMEM vs. default double-buffering).
    """
    idx = lambda b, s, _n=w.ndim: (0,) * _n
    if _HAS_BUFFERED:
        return pl.BlockSpec(w.shape, idx, pipeline_mode=pl.Buffered(1))
    return pl.BlockSpec(w.shape, idx)


def _layer_norm_f32(x_f32, w_ref, b_ref, eps):
    """LayerNorm with f32 statistics; gamma/beta read from (1, D) refs."""
    mu = jnp.mean(x_f32, axis=-1, keepdims=True)
    var = jnp.mean(jnp.square(x_f32 - mu), axis=-1, keepdims=True)
    inv = jax.lax.rsqrt(var + eps)
    return (x_f32 - mu) * inv * w_ref[...].astype(jnp.float32) \
        + b_ref[...].astype(jnp.float32)


# ----------------------------------------------------------------------------
# Kernel A: LayerNorm1 + fused QKV projection (q pre-scaled by 1/sqrt(dh)).
# Grid: (B, S_pad // seq_tile); each step handles one (seq_tile, D) row block.
# ----------------------------------------------------------------------------
def qkv_kernel(x_ref, ln1_w_ref, ln1_b_ref, wqkv_ref, bqkv_ref,
               q_ref, k_ref, v_ref, *, dim, eps, q_scale):
    f32 = jnp.float32
    x = x_ref[0].astype(f32)                                    # (ts, D)
    h = _layer_norm_f32(x, ln1_w_ref, ln1_b_ref, eps).astype(wqkv_ref.dtype)

    # One fused (ts, D) x (D, 3D) MXU matmul; f32 accumulation.
    qkv = jnp.dot(h, wqkv_ref[...], preferred_element_type=f32) \
        + bqkv_ref[...].astype(f32)                             # (ts, 3D)

    # Lane-aligned slices at multiples of D; fold 1/sqrt(dh) into q.
    q_ref[0] = (qkv[:, :dim] * q_scale).astype(q_ref.dtype)
    k_ref[0] = qkv[:, dim:2 * dim].astype(k_ref.dtype)
    v_ref[0] = qkv[:, 2 * dim:].astype(v_ref.dtype)


# ----------------------------------------------------------------------------
# Shared kernel bodies (attention / FFN) used by fused and split pallas_calls.
# ----------------------------------------------------------------------------
def _attention_body(x, q_ref, k_ref, v_ref, wo_ref, bo_ref, ls1_ref, ctx_ref,
                    *, heads, seq_len, exp_dtype):
    """x: (tq, D) f32 residual. Returns x + ls1 * attn_out(x_ln1) in f32."""
    f32 = jnp.float32
    q = q_ref[0]                              # (tq, D) bf16, already scaled
    k = k_ref[0]                              # (s_kv, D)
    v = v_ref[0]                              # (s_kv, D)
    tq, D = q.shape
    s_kv = k.shape[0]
    dh = D // heads

    # Mask for padded key positions (built only if actually padded).
    if seq_len < s_kv:
        kpos = jax.lax.broadcasted_iota(jnp.int32, (1, s_kv), 1)
        kbias = jnp.where(kpos < seq_len, 0.0, -1e30).astype(f32)
    else:
        kbias = None

    # Per-head attention on static lane slices (no head transposes).  Each
    # head's context lands in its lane slice of the (tq, D) ctx scratch; the
    # output projection is then ONE full-depth (tq, D) @ (D, D) matmul.
    # TODO(synk): if bundle dumps show spills at large tq, switch this static
    # loop to lax.fori_loop to bound live ranges to a single head.
    for h in range(heads):
        sl = slice(h * dh, (h + 1) * dh)
        s = jax.lax.dot_general(q[:, sl], k[:, sl], (((1,), (1,)), ((), ())),
                                preferred_element_type=f32)     # (tq, s_kv)
        if kbias is not None:
            s = s + kbias
        m = jnp.max(s, axis=-1, keepdims=True)
        e = jnp.exp((s - m).astype(exp_dtype))                  # bf16 on v6e/v7x
        l = jnp.sum(e.astype(f32), axis=-1, keepdims=True)
        r = pl.reciprocal(l, approx=True)
        p = (e * r.astype(e.dtype)).astype(v.dtype)
        ctx_ref[:, sl] = jnp.dot(p, v[:, sl],
                                 preferred_element_type=f32).astype(ctx_ref.dtype)

    attn = jnp.dot(ctx_ref[...].astype(wo_ref.dtype), wo_ref[...],
                   preferred_element_type=f32) + bo_ref[...].astype(f32)
    return x + ls1_ref[...].astype(f32) * attn


def _ffn_body(x, ln2_w_ref, ln2_b_ref, wg_ref, bg_ref, wu_ref, bu_ref,
              wout_ref, bout_ref, ls2_ref, *, eps):
    """x: (tq, D) f32 residual. Returns x + ls2 * SwiGLU(LN2(x)) in f32."""
    f32 = jnp.float32
    h2 = _layer_norm_f32(x, ln2_w_ref, ln2_b_ref, eps).astype(wg_ref.dtype)
    gate = jnp.dot(h2, wg_ref[...], preferred_element_type=f32) \
        + bg_ref[...].astype(f32)
    up = jnp.dot(h2, wu_ref[...], preferred_element_type=f32) \
        + bu_ref[...].astype(f32)
    act = (gate * jax.nn.sigmoid(gate)) * up                    # silu(gate)*up
    ff = jnp.dot(act.astype(wout_ref.dtype), wout_ref[...],
                 preferred_element_type=f32) + bout_ref[...].astype(f32)
    return x + ls2_ref[...].astype(f32) * ff


# ----------------------------------------------------------------------------
# Kernel B (fused): attention + LayerScale residual + LN2 + SwiGLU + residual.
# ----------------------------------------------------------------------------
def attn_ffn_kernel(x_ref, q_ref, k_ref, v_ref,
                    wo_ref, bo_ref, ls1_ref,
                    ln2_w_ref, ln2_b_ref, wg_ref, bg_ref, wu_ref, bu_ref,
                    wout_ref, bout_ref, ls2_ref,
                    o_ref, ctx_ref, *, heads, eps, seq_len, exp_dtype):
    x = x_ref[0].astype(jnp.float32)
    x = _attention_body(x, q_ref, k_ref, v_ref, wo_ref, bo_ref, ls1_ref,
                        ctx_ref, heads=heads, seq_len=seq_len,
                        exp_dtype=exp_dtype)
    x = _ffn_body(x, ln2_w_ref, ln2_b_ref, wg_ref, bg_ref, wu_ref, bu_ref,
                  wout_ref, bout_ref, ls2_ref, eps=eps)
    o_ref[0] = x.astype(o_ref.dtype)


# Split variants (used on small-VMEM parts, e.g. v7x).
def attn_kernel(x_ref, q_ref, k_ref, v_ref, wo_ref, bo_ref, ls1_ref,
                o_ref, ctx_ref, *, heads, seq_len, exp_dtype):
    x = x_ref[0].astype(jnp.float32)
    x = _attention_body(x, q_ref, k_ref, v_ref, wo_ref, bo_ref, ls1_ref,
                        ctx_ref, heads=heads, seq_len=seq_len,
                        exp_dtype=exp_dtype)
    o_ref[0] = x.astype(o_ref.dtype)


def ffn_kernel(x_ref, ln2_w_ref, ln2_b_ref, wg_ref, bg_ref, wu_ref, bu_ref,
               wout_ref, bout_ref, ls2_ref, o_ref, *, eps):
    x = x_ref[0].astype(jnp.float32)
    x = _ffn_body(x, ln2_w_ref, ln2_b_ref, wg_ref, bg_ref, wu_ref, bu_ref,
                  wout_ref, bout_ref, ls2_ref, eps=eps)
    o_ref[0] = x.astype(o_ref.dtype)


# ----------------------------------------------------------------------------
# Block wrapper.
# ----------------------------------------------------------------------------
_ATTN_KEYS = ("wo", "bo", "ls1")
_FFN_KEYS = ("ln2_w", "ln2_b", "w_gate", "b_gate", "w_up", "b_up",
             "w_out", "b_out", "ls2")


def dino2_block(x, params, *, heads, eps, seq_len, seq_tile, hw):
    B, S_pad, D = x.shape
    assert S_pad % seq_tile == 0 and D % heads == 0 and seq_tile % 8 == 0
    dh = D // heads
    hidden = params["w_gate"].shape[1]
    n_seq = S_pad // seq_tile
    dt = x.dtype
    itemsize = dt.itemsize
    wmult = 1 if _HAS_BUFFERED else 2

    # Keys only need 128-lane alignment (not the q-tile multiple): avoids up
    # to seq_tile-1 dead key columns of QK / PV / exp work.
    s_kv = min(S_pad, _round_up(seq_len, 128))

    tile_bytes = seq_tile * D * itemsize
    kv_block_bytes = s_kv * D * itemsize

    row_spec = pl.BlockSpec((1, seq_tile, D), lambda b, s: (b, s, 0))
    if _HAS_BUFFERED and hw["kv_buffers"] == 1:
        kv_spec = pl.BlockSpec((1, s_kv, D), lambda b, s: (b, 0, 0),
                               pipeline_mode=pl.Buffered(1))
    else:
        kv_spec = pl.BlockSpec((1, s_kv, D), lambda b, s: (b, 0, 0))

    # ---- kernel A: LN1 + fused QKV ------------------------------------------
    a_weights = [params["ln1_w"], params["ln1_b"],
                 params["wqkv"], params["bqkv"]]
    wbytes_a = sum(_nbytes(w) for w in a_weights)
    est_a = (wmult * wbytes_a
             + 2 * 4 * tile_bytes              # x + q/k/v row tiles (dbl-buf)
             + seq_tile * D * 4 * 5)           # f32 temporaries (x, qkv)
    cost_a = pl.CostEstimate(
        flops=int(2 * B * S_pad * D * 3 * D),
        transcendentals=int(B * S_pad),
        bytes_accessed=int(4 * B * S_pad * D * itemsize + wbytes_a))

    kA = functools.partial(qkv_kernel, dim=D, eps=eps,
                           q_scale=1.0 / math.sqrt(dh))
    q, k, v = pl.pallas_call(
        kA,
        grid=(B, n_seq),
        in_specs=[row_spec] + [_weight_spec(w) for w in a_weights],
        out_specs=(row_spec, row_spec, row_spec),
        out_shape=(jax.ShapeDtypeStruct((B, S_pad, D), dt),) * 3,
        compiler_params=pltpu.CompilerParams(
            dimension_semantics=("parallel", "parallel"),
            vmem_limit_bytes=_vmem_limit(hw, est_a)),
        cost_estimate=cost_a,
    )(x, *a_weights)

    # ---- kernel B: attention (+ FFN when fused) ------------------------------
    attn_w = [params[n] for n in _ATTN_KEYS]
    ffn_w = [params[n] for n in _FFN_KEYS]
    wbytes_attn = sum(_nbytes(w) for w in attn_w)
    wbytes_ffn = sum(_nbytes(w) for w in ffn_w)

    est_attn = (wmult * wbytes_attn
                + hw["kv_buffers"] * 2 * kv_block_bytes        # K and V blocks
                + 2 * 3 * tile_bytes                           # x, q, out tiles
                + tile_bytes                                   # ctx scratch
                + seq_tile * s_kv * 4 * 2                      # scores / exp
                + seq_tile * D * 4 * 4)                        # f32 temps
    est_ffn = (wmult * wbytes_ffn
               + 2 * 2 * tile_bytes
               + seq_tile * D * 4 * 3
               + seq_tile * hidden * 4 * 3)                    # gate/up/act f32

    cost_attn = pl.CostEstimate(
        flops=int(B * (4 * S_pad * s_kv * D + 2 * S_pad * D * D)),
        transcendentals=int(B * heads * S_pad * s_kv),
        bytes_accessed=int((3 * B * S_pad * D + 2 * B * s_kv * D) * itemsize
                           + wbytes_attn))
    cost_ffn = pl.CostEstimate(
        flops=int(6 * B * S_pad * D * hidden),
        transcendentals=int(B * S_pad * hidden + B * S_pad),
        bytes_accessed=int(2 * B * S_pad * D * itemsize + wbytes_ffn))

    if not hw["split_ffn"]:
        # Fused attention + FFN (128 MiB VMEM parts: v5e / v6e).
        b_weights = attn_w + ffn_w
        cost_b = pl.CostEstimate(
            flops=int(cost_attn.flops + cost_ffn.flops),
            transcendentals=int(cost_attn.transcendentals
                                + cost_ffn.transcendentals),
            bytes_accessed=int(cost_attn.bytes_accessed
                               + cost_ffn.bytes_accessed))
        kB = functools.partial(attn_ffn_kernel, heads=heads, eps=eps,
                               seq_len=seq_len, exp_dtype=hw["exp_dtype"])
        return pl.pallas_call(
            kB,
            grid=(B, n_seq),
            in_specs=([row_spec, row_spec, kv_spec, kv_spec]
                      + [_weight_spec(w) for w in b_weights]),
            out_specs=row_spec,
            out_shape=jax.ShapeDtypeStruct((B, S_pad, D), dt),
            scratch_shapes=[pltpu.VMEM((seq_tile, D), dt)],
            compiler_params=pltpu.CompilerParams(
                dimension_semantics=("parallel", "parallel"),
                vmem_limit_bytes=_vmem_limit(hw, est_attn + est_ffn)),
            cost_estimate=cost_b,
        )(x, q, k, v, *b_weights)

    # Split path (64 MiB VMEM parts: v7x): attention call, then FFN call.
    kAttn = functools.partial(attn_kernel, heads=heads, seq_len=seq_len,
                              exp_dtype=hw["exp_dtype"])
    xa = pl.pallas_call(
        kAttn,
        grid=(B, n_seq),
        in_specs=([row_spec, row_spec, kv_spec, kv_spec]
                  + [_weight_spec(w) for w in attn_w]),
        out_specs=row_spec,
        out_shape=jax.ShapeDtypeStruct((B, S_pad, D), dt),
        scratch_shapes=[pltpu.VMEM((seq_tile, D), dt)],
        compiler_params=pltpu.CompilerParams(
            dimension_semantics=("parallel", "parallel"),
            vmem_limit_bytes=_vmem_limit(hw, est_attn)),
        cost_estimate=cost_attn,
    )(x, q, k, v, *attn_w)

    kF = functools.partial(ffn_kernel, eps=eps)
    return pl.pallas_call(
        kF,
        grid=(B, n_seq),
        in_specs=[row_spec] + [_weight_spec(w) for w in ffn_w],
        out_specs=row_spec,
        out_shape=jax.ShapeDtypeStruct((B, S_pad, D), dt),
        compiler_params=pltpu.CompilerParams(
            dimension_semantics=("parallel", "parallel"),
            vmem_limit_bytes=_vmem_limit(hw, est_ffn)),
        cost_estimate=cost_ffn,
    )(xa, *ffn_w)


def dino2_encoder(x, layer_params, *, heads, eps, intermediate_output=None,
                  seq_tile=None):
    """Mirrors Dino2Encoder.forward: returns (x, intermediate)."""
    B, S, D = x.shape
    hw = _hw_config()
    if seq_tile is None:
        # Fill the MXU rows (256 on v6e/v7x, 128 on v5e) without over-padding
        # short sequences.
        seq_tile = min(hw["seq_tile"], _round_up(S, 128))
    num_layers = len(layer_params)
    if intermediate_output is not None and intermediate_output < 0:
        intermediate_output = num_layers + intermediate_output

    # Pad sequence once to a tile-aligned length; padded keys are masked inside
    # the attention kernel and padded rows are sliced off at the end.
    s_pad = _round_up(S, seq_tile)
    xp = x if s_pad == S else jnp.pad(x, ((0, 0), (0, s_pad - S), (0, 0)))

    intermediate = None
    # TODO(synk): hide layer i+1's weight HBM->VMEM fetch behind layer i's
    # compute via a cross-pallas_call DMA future (semaphore + VMEM outputs).
    # TODO(synk): on v5e, compute Q inside the attention kernel from the LN1'd
    # row tile to drop one of the three Q/K/V HBM round trips.
    for i, params in enumerate(layer_params):
        xp = dino2_block(xp, params, heads=heads, eps=eps, seq_len=S,
                         seq_tile=seq_tile, hw=hw)
        if i == intermediate_output:
            intermediate = xp[:, :S, :]
    return xp[:, :S, :], intermediate


# ----------------------------------------------------------------------------
# Deterministic parameter initialization (synthetic; matches module shapes).
# ----------------------------------------------------------------------------
def init_block_params(key, dim, dtype=jnp.bfloat16):
    hidden = int(dim * 4)
    hidden = (int(hidden * 2 / 3) + 7) // 8 * 8
    ks = jax.random.split(key, 10)
    s = 0.02

    def lin(k, din, dout):
        kw, kb = jax.random.split(k)
        return (jax.random.normal(kw, (din, dout), dtype) * s,
                jax.random.normal(kb, (1, dout), dtype) * s)

    wq, bq = lin(ks[0], dim, dim)
    wk, bk = lin(ks[1], dim, dim)
    wv, bv = lin(ks[2], dim, dim)
    wo, bo = lin(ks[3], dim, dim)
    wg, bg = lin(ks[4], dim, hidden)
    wu, bu = lin(ks[5], dim, hidden)
    wout, bout = lin(ks[6], hidden, dim)
    return {
        "ln1_w": jnp.ones((1, dim), dtype), "ln1_b": jnp.zeros((1, dim), dtype),
        "wqkv": jnp.concatenate([wq, wk, wv], axis=1),   # (D, 3D) fused
        "bqkv": jnp.concatenate([bq, bk, bv], axis=1),   # (1, 3D)
        "wo": wo, "bo": bo,
        "ls1": (jax.random.normal(ks[7], (1, dim), dtype) * s + 1.0).astype(dtype),
        "ln2_w": jnp.ones((1, dim), dtype), "ln2_b": jnp.zeros((1, dim), dtype),
        "w_gate": wg, "b_gate": bg,          # first half of SwiGLU weights_in
        "w_up": wu, "b_up": bu,              # second half of SwiGLU weights_in
        "w_out": wout, "b_out": bout,
        "ls2": (jax.random.normal(ks[8], (1, dim), dtype) * s + 1.0).astype(dtype),
    }


# ----------------------------------------------------------------------------
# Pure-JAX f32 reference (correctness check for the Pallas kernels).
# ----------------------------------------------------------------------------
def ref_block(x, p, heads, eps):
    p = {kk: vv.astype(jnp.float32) for kk, vv in p.items()}
    B, S, D = x.shape
    dh = D // heads

    def ln(v, w, b):
        mu = jnp.mean(v, -1, keepdims=True)
        var = jnp.mean((v - mu) ** 2, -1, keepdims=True)
        return (v - mu) / jnp.sqrt(var + eps) * w[0] + b[0]

    h = ln(x, p["ln1_w"], p["ln1_b"])
    qkv = h @ p["wqkv"] + p["bqkv"][0]
    q, k, v = qkv[..., :D], qkv[..., D:2 * D], qkv[..., 2 * D:]
    q = q.reshape(B, S, heads, dh).transpose(0, 2, 1, 3)
    k = k.reshape(B, S, heads, dh).transpose(0, 2, 1, 3)
    v = v.reshape(B, S, heads, dh).transpose(0, 2, 1, 3)
    sc = jnp.einsum("bhqd,bhkd->bhqk", q, k) / math.sqrt(dh)
    pw = jax.nn.softmax(sc, axis=-1)
    a = jnp.einsum("bhqk,bhkd->bhqd", pw, v).transpose(0, 2, 1, 3).reshape(B, S, D)
    a = a @ p["wo"] + p["bo"][0]
    x = x + p["ls1"][0] * a

    h2 = ln(x, p["ln2_w"], p["ln2_b"])
    gate = h2 @ p["w_gate"] + p["b_gate"][0]
    up = h2 @ p["w_up"] + p["b_up"][0]
    ff = jax.nn.silu(gate) * up
    ff = ff @ p["w_out"] + p["b_out"][0]
    return x + p["ls2"][0] * ff


def ref_encoder(x, layer_params, heads, eps, intermediate_output=None):
    n = len(layer_params)
    if intermediate_output is not None and intermediate_output < 0:
        intermediate_output = n + intermediate_output
    inter = None
    for i, p in enumerate(layer_params):
        x = ref_block(x, p, heads, eps)
        if i == intermediate_output:
            inter = x
    return x, inter


# ----------------------------------------------------------------------------
if __name__ == "__main__":
    D, heads, eps = 64, 4, 1e-6
    key = jax.random.PRNGKey(0)

    def run_case(kx, kp, B, S, num_layers, seq_tile, intermediate_output):
        x = jax.random.normal(kx, (B, S, D), jnp.float32).astype(jnp.bfloat16)
        layer_params = [init_block_params(k, D)
                        for k in jax.random.split(kp, num_layers)]
        out, inter = dino2_encoder(x, layer_params, heads=heads, eps=eps,
                                   intermediate_output=intermediate_output,
                                   seq_tile=seq_tile)
        out = jax.block_until_ready(out)
        ref_out, ref_inter = ref_encoder(x.astype(jnp.float32), layer_params,
                                         heads, eps,
                                         intermediate_output=intermediate_output)
        assert jnp.allclose(out.astype(jnp.float32), ref_out,
                            atol=5e-2, rtol=5e-2), "final mismatch"
        if intermediate_output is not None:
            inter = jax.block_until_ready(inter)
            assert jnp.allclose(inter.astype(jnp.float32), ref_inter,
                                atol=5e-2, rtol=5e-2), "intermediate mismatch"

    keys = jax.random.split(key, 6)
    # Case 1: auto (per-generation) seq_tile, padded keys masked, 3 layers.
    run_case(keys[0], keys[1], B=2, S=200, num_layers=3,
             seq_tile=None, intermediate_output=-2)
    # Case 2: explicit 128-tile -> multiple q-tiles per batch element.
    run_case(keys[2], keys[3], B=2, S=200, num_layers=1,
             seq_tile=128, intermediate_output=None)
    # Case 3: K/V block (round_up(S,128)) smaller than the padded q length.
    run_case(keys[4], keys[5], B=2, S=72, num_layers=1,
             seq_tile=256, intermediate_output=None)

    print("KERNEL_OK")
</pallas_src>

<mosaic_0001>
module attributes {stable_mosaic.version = 11 : i64} {
  func.func @qkv_kernel(%arg0: i32, %arg1: i32, %arg2: memref<1x256x64xbf16, #tpu.memory_space<vmem>>, %arg3: memref<1x64xbf16, #tpu.memory_space<vmem>>, %arg4: memref<1x64xbf16, #tpu.memory_space<vmem>>, %arg5: memref<64x192xbf16, #tpu.memory_space<vmem>>, %arg6: memref<1x192xbf16, #tpu.memory_space<vmem>>, %arg7: memref<1x256x64xbf16, #tpu.memory_space<vmem>>, %arg8: memref<1x256x64xbf16, #tpu.memory_space<vmem>>, %arg9: memref<1x256x64xbf16, #tpu.memory_space<vmem>>) attributes {dimension_semantics = [#tpu.dimension_semantics<parallel>, #tpu.dimension_semantics<parallel>], iteration_bounds = array<i64: 2, 1>, scalar_prefetch = 0 : i64, scratch_operands = 0 : i64, tpu.core_type = #tpu.core_type<tc>, window_params = [{transform_indices = @transform_0, window_bounds = array<i64: 1, 256, 64>}, {pipeline_mode = #tpu.pipeline_mode<synchronous>, transform_indices = @transform_1, window_bounds = array<i64: 1, 64>}, {pipeline_mode = #tpu.pipeline_mode<synchronous>, transform_indices = @transform_2, window_bounds = array<i64: 1, 64>}, {pipeline_mode = #tpu.pipeline_mode<synchronous>, transform_indices = @transform_3, window_bounds = array<i64: 64, 192>}, {pipeline_mode = #tpu.pipeline_mode<synchronous>, transform_indices = @transform_4, window_bounds = array<i64: 1, 192>}, {transform_indices = @transform_5, window_bounds = array<i64: 1, 256, 64>}, {transform_indices = @transform_6, window_bounds = array<i64: 1, 256, 64>}, {transform_indices = @transform_7, window_bounds = array<i64: 1, 256, 64>}]} {
    %c0 = arith.constant 0 : index
    %c0_0 = arith.constant 0 : index
    %c0_1 = arith.constant 0 : index
    %0 = vector.load %arg2[%c0, %c0_0, %c0_1] : memref<1x256x64xbf16, #tpu.memory_space<vmem>>, vector<1x256x64xbf16>
    %1 = vector.shape_cast %0 : vector<1x256x64xbf16> to vector<256x64xbf16>
    %2 = arith.extf %1 : vector<256x64xbf16> to vector<256x64xf32>
    %cst = arith.constant dense<0.000000e+00> : vector<256xf32>
    %3 = vector.multi_reduction <add>, %2, %cst [1] : vector<256x64xf32> to vector<256xf32>
    %4 = vector.shape_cast %3 : vector<256xf32> to vector<256x1xf32>
    %cst_2 = arith.constant 6.400000e+01 : f32
    %5 = vector.broadcast %cst_2 : f32 to vector<256x1xf32>
    %6 = arith.divf %4, %5 : vector<256x1xf32>
    %7 = vector.broadcast %6 : vector<256x1xf32> to vector<256x64xf32>
    %8 = arith.subf %2, %7 : vector<256x64xf32>
    %9 = arith.mulf %8, %8 : vector<256x64xf32>
    %cst_3 = arith.constant dense<0.000000e+00> : vector<256xf32>
    %10 = vector.multi_reduction <add>, %9, %cst_3 [1] : vector<256x64xf32> to vector<256xf32>
    %11 = vector.shape_cast %10 : vector<256xf32> to vector<256x1xf32>
    %cst_4 = arith.constant 6.400000e+01 : f32
    %12 = vector.broadcast %cst_4 : f32 to vector<256x1xf32>
    %13 = arith.divf %11, %12 : vector<256x1xf32>
    %cst_5 = arith.constant 9.99999997E-7 : f32
    %14 = vector.broadcast %cst_5 : f32 to vector<256x1xf32>
    %15 = arith.addf %13, %14 : vector<256x1xf32>
    %16 = math.rsqrt %15 : vector<256x1xf32>
    %17 = vector.broadcast %6 : vector<256x1xf32> to vector<256x64xf32>
    %18 = arith.subf %2, %17 : vector<256x64xf32>
    %19 = vector.broadcast %16 : vector<256x1xf32> to vector<256x64xf32>
    %20 = arith.mulf %18, %19 : vector<256x64xf32>
    %c0_6 = arith.constant 0 : index
    %c0_7 = arith.constant 0 : index
    %21 = vector.load %arg3[%c0_6, %c0_7] : memref<1x64xbf16, #tpu.memory_space<vmem>>, vector<1x64xbf16>
    %22 = arith.extf %21 : vector<1x64xbf16> to vector<1x64xf32>
    %23 = vector.broadcast %22 : vector<1x64xf32> to vector<256x64xf32>
    %24 = arith.mulf %20, %23 : vector<256x64xf32>
    %c0_8 = arith.constant 0 : index
    %c0_9 = arith.constant 0 : index
    %25 = vector.load %arg4[%c0_8, %c0_9] : memref<1x64xbf16, #tpu.memory_space<vmem>>, vector<1x64xbf16>
    %26 = arith.extf %25 : vector<1x64xbf16> to vector<1x64xf32>
    %27 = vector.broadcast %26 : vector<1x64xf32> to vector<256x64xf32>
    %28 = arith.addf %24, %27 : vector<256x64xf32>
    %29 = arith.truncf %28 : vector<256x64xf32> to vector<256x64xbf16>
    %c0_10 = arith.constant 0 : index
    %c0_11 = arith.constant 0 : index
    %30 = vector.load %arg5[%c0_10, %c0_11] : memref<64x192xbf16, #tpu.memory_space<vmem>>, vector<64x192xbf16>
    %cst_12 = arith.constant dense<0.000000e+00> : vector<256x192xf32>
    %31 = tpu.matmul %29, %30, %cst_12 {dimension_numbers = #tpu.dot_dimension_numbers<[1], [0], [0], [1], [0, 0, 1, 1], [], []>} : vector<256x64xbf16>, vector<64x192xbf16>, vector<256x192xf32> -> vector<256x192xf32>
    %c0_13 = arith.constant 0 : index
    %c0_14 = arith.constant 0 : index
    %32 = vector.load %arg6[%c0_13, %c0_14] : memref<1x192xbf16, #tpu.memory_space<vmem>>, vector<1x192xbf16>
    %33 = arith.extf %32 : vector<1x192xbf16> to vector<1x192xf32>
    %34 = vector.broadcast %33 : vector<1x192xf32> to vector<256x192xf32>
    %35 = arith.addf %31, %34 : vector<256x192xf32>
    %36 = vector.extract_strided_slice %35 {offsets = [0, 0], sizes = [256, 64], strides = [1, 1]} : vector<256x192xf32> to vector<256x64xf32>
    %cst_15 = arith.constant 2.500000e-01 : f32
    %37 = vector.broadcast %cst_15 : f32 to vector<256x64xf32>
    %38 = arith.mulf %36, %37 : vector<256x64xf32>
    %39 = arith.truncf %38 : vector<256x64xf32> to vector<256x64xbf16>
    %c0_16 = arith.constant 0 : index
    %c0_17 = arith.constant 0 : index
    %c0_18 = arith.constant 0 : index
    %40 = vector.load %arg7[%c0_16, %c0_17, %c0_18] : memref<1x256x64xbf16, #tpu.memory_space<vmem>>, vector<1x256x64xbf16>
    %41 = vector.shape_cast %40 : vector<1x256x64xbf16> to vector<256x64xbf16>
    %42 = vector.shape_cast %39 : vector<256x64xbf16> to vector<1x256x64xbf16>
    tpu.vector_store %arg7[%c0_16, %c0_17, %c0_18], %42 {strides = array<i32>} : memref<1x256x64xbf16, #tpu.memory_space<vmem>>, vector<1x256x64xbf16>,
    %43 = vector.extract_strided_slice %35 {offsets = [0, 64], sizes = [256, 64], strides = [1, 1]} : vector<256x192xf32> to vector<256x64xf32>
    %44 = arith.truncf %43 : vector<256x64xf32> to vector<256x64xbf16>
    %c0_19 = arith.constant 0 : index
    %c0_20 = arith.constant 0 : index
    %c0_21 = arith.constant 0 : index
    %45 = vector.load %arg8[%c0_19, %c0_20, %c0_21] : memref<1x256x64xbf16, #tpu.memory_space<vmem>>, vector<1x256x64xbf16>
    %46 = vector.shape_cast %45 : vector<1x256x64xbf16> to vector<256x64xbf16>
    %47 = vector.shape_cast %44 : vector<256x64xbf16> to vector<1x256x64xbf16>
    tpu.vector_store %arg8[%c0_19, %c0_20, %c0_21], %47 {strides = array<i32>} : memref<1x256x64xbf16, #tpu.memory_space<vmem>>, vector<1x256x64xbf16>,
    %48 = vector.extract_strided_slice %35 {offsets = [0, 128], sizes = [256, 64], strides = [1, 1]} : vector<256x192xf32> to vector<256x64xf32>
    %49 = arith.truncf %48 : vector<256x64xf32> to vector<256x64xbf16>
    %c0_22 = arith.constant 0 : index
    %c0_23 = arith.constant 0 : index
    %c0_24 = arith.constant 0 : index
    %50 = vector.load %arg9[%c0_22, %c0_23, %c0_24] : memref<1x256x64xbf16, #tpu.memory_space<vmem>>, vector<1x256x64xbf16>
    %51 = vector.shape_cast %50 : vector<1x256x64xbf16> to vector<256x64xbf16>
    %52 = vector.shape_cast %49 : vector<256x64xbf16> to vector<1x256x64xbf16>
    tpu.vector_store %arg9[%c0_22, %c0_23, %c0_24], %52 {strides = array<i32>} : memref<1x256x64xbf16, #tpu.memory_space<vmem>>, vector<1x256x64xbf16>,
    return
  }
  func.func @transform_0(%arg0: i32, %arg1: i32) -> (i32, i32, i32) {
    %c0_i32 = arith.constant 0 : i32
    %c0_i32_0 = arith.constant 0 : i32
    return %arg0, %arg1, %c0_i32 : i32, i32, i32
  }
  func.func @transform_1(%arg0: i32, %arg1: i32) -> (i32, i32) {
    %c0_i32 = arith.constant 0 : i32
    %c0_i32_0 = arith.constant 0 : i32
    %c0_i32_1 = arith.constant 0 : i32
    return %c0_i32, %c0_i32_0 : i32, i32
  }
  func.func @transform_2(%arg0: i32, %arg1: i32) -> (i32, i32) {
    %c0_i32 = arith.constant 0 : i32
    %c0_i32_0 = arith.constant 0 : i32
    %c0_i32_1 = arith.constant 0 : i32
    return %c0_i32, %c0_i32_0 : i32, i32
  }
  func.func @transform_3(%arg0: i32, %arg1: i32) -> (i32, i32) {
    %c0_i32 = arith.constant 0 : i32
    %c0_i32_0 = arith.constant 0 : i32
    %c0_i32_1 = arith.constant 0 : i32
    return %c0_i32, %c0_i32_0 : i32, i32
  }
  func.func @transform_4(%arg0: i32, %arg1: i32) -> (i32, i32) {
    %c0_i32 = arith.constant 0 : i32
    %c0_i32_0 = arith.constant 0 : i32
    %c0_i32_1 = arith.constant 0 : i32
    return %c0_i32, %c0_i32_0 : i32, i32
  }
  func.func @transform_5(%arg0: i32, %arg1: i32) -> (i32, i32, i32) {
    %c0_i32 = arith.constant 0 : i32
    %c0_i32_0 = arith.constant 0 : i32
    return %arg0, %arg1, %c0_i32 : i32, i32, i32
  }
  func.func @transform_6(%arg0: i32, %arg1: i32) -> (i32, i32, i32) {
    %c0_i32 = arith.constant 0 : i32
    %c0_i32_0 = arith.constant 0 : i32
    return %arg0, %arg1, %c0_i32 : i32, i32, i32
  }
  func.func @transform_7(%arg0: i32, %arg1: i32) -> (i32, i32, i32) {
    %c0_i32 = arith.constant 0 : i32
    %c0_i32_0 = arith.constant 0 : i32
    return %arg0, %arg1, %c0_i32 : i32, i32, i32
  }
}

</mosaic_0001>

<llo_original>
// kernel: tpu_custom_call.1
$region0: #{tpu_custom_call.1}
  #allocation0 [shape = 'u32[]', space=smem, size = 0x4, offset = 0x4, fixed_abs, tag = 'smem constant byte address 0x4 - core index']
  #allocation1 [shape = 'u32[72,128]{1,0:T(1,128)}', space=vmem, size = 0x9000, scoped, tag = 'internal scratch']
  %s0 = inlined_call_operand.vmem [shape: bf16[2,256,64], index: 0, kind: input, shape index: {}]
  %s1 = inlined_call_operand.vmem [shape: bf16[1,64], index: 1, kind: input, shape index: {}]
  %s2 = inlined_call_operand.vmem [shape: bf16[1,64], index: 2, kind: input, shape index: {}]
  %s3 = inlined_call_operand.vmem [shape: bf16[64,192], index: 3, kind: input, shape index: {}]
  %s4 = inlined_call_operand.vmem [shape: bf16[1,192], index: 4, kind: input, shape index: {}]
  %s5 = inlined_call_operand.vmem [shape: bf16[2,256,64], index: 5, kind: output, shape index: {0}]
  %s6 = inlined_call_operand.vmem [shape: bf16[2,256,64], index: 6, kind: output, shape index: {1}]
  %s7 = inlined_call_operand.vmem [shape: bf16[2,256,64], index: 7, kind: output, shape index: {2}]
  %8 = xla_tuple %s5, %s6, %s7
  %s9 = sld [smem:[#allocation0]]
  $region69: #{tpu_custom_call.1} parent=0
    _
  %s11 = ssub.s32 1, %s9
  %s12 = scalar_select 0, %s11, %s9
  loop: start=0, step=1, limit=4
  $region2: #{tpu_custom_call.1} parent=0 // loop_pre_header
    _
  $region3: #{tpu_custom_call.1} parent=0 // loop_header
    %s14 = sphi 0, %s18
    %p15 = scmp.ge.s32.totalorder %s14, 4
    %s21 = sphi 0, %s33
    %s22 = sphi 0, %s29
    %s23 = sphi 0, %s21
    %s24 = sphi 0, %s22
    %s25 = sphi 0, %s23
    %s26 = sphi 0, %s24
    %s38 = sphi 0, %s40
    %s41 = sphi 0, %s38
    %s42 = sphi 0, %s41
    %s58 = sphi 0, %s42
    %s62 = sphi 0, %s62
    %s64 = sphi 0, %s62
    %s65 = sphi 0, %s64
    %s79 = sphi 0, %s65
    %s83 = sphi 0, %s83
    %s85 = sphi 0, %s83
    %s86 = sphi 0, %s85
    %s100 = sphi 0, %s86
    %s104 = sphi 0, %s104
    %s106 = sphi 0, %s104
    %s107 = sphi 0, %s106
    %s121 = sphi 0, %s107
    %s125 = sphi 0, %s125
    %s127 = sphi 0, %s125
    %s128 = sphi 0, %s127
    %s142 = sphi 0, %s128
    %s150 = sphi 0, %s152
    %s153 = sphi 0, %s150
    %s154 = sphi 0, %s153
    %s170 = sphi 0, %s154
    %s178 = sphi 0, %s180
    %s181 = sphi 0, %s178
    %s182 = sphi 0, %s181
    %s198 = sphi 0, %s182
    %s206 = sphi 0, %s208
    %s209 = sphi 0, %s206
    %s210 = sphi 0, %s209
    %s226 = sphi 0, %s210
  $region4: #{tpu_custom_call.1} parent=0 // loop_header_branch
    %17 = sbr.rel (%p15) target = $region8
  $region5: #{tpu_custom_call.1} parent=0 // loop_body
    %s19 = ssub.s32 %s14, 1
    %s20 = ssub.s32 %s14, 2
    %s27 = sadd.s32 1, %s22
    %p28 = scmp.ge.s32.totalorder %s27, 1
    %s29 = scalar_select %p28, 0, %s27
    %s30 = sadd.s32 1, %s21
    %s31 = scalar_select %p28, %s30, %s21
    %p32 = scmp.ge.s32.totalorder %s31, 2
    %s33 = scalar_select %p32, 0, %s31
    %s34 = ssub.s32 %s21, %s33
    %s35 = ssub.s32 %s22, %s29
    %s36 = sor.u32 %s34, %s35
    %p37 = scmp.eq.s32.totalorder %s36, 0
    %s39 = sadd.s32 %s38, 1
    %s40 = scalar_select %p37, %s38, %s39
    %p43 = pneg %p37
    %p44 = scmp.eq.s32.totalorder %s14, 1
    %p45 = por %p43, %p44
    %p46 = scmp.ne.s32.totalorder %s38, %s41
    %p47 = scmp.eq.s32.totalorder %s14, 0
    %p48 = por %p46, %p47
    %p49 = scmp.ne.s32.totalorder %s38, %s41
    %p50 = scmp.eq.s32.totalorder %s19, 1
    %p51 = por %p49, %p50
    %p52 = scmp.ne.s32.totalorder %s41, %s42
    %p53 = scmp.eq.s32.totalorder %s19, 0
    %p54 = por %p52, %p53
    %p55 = scmp.ne.s32.totalorder %s41, %s42
    %p56 = scmp.eq.s32.totalorder %s20, 1
    %p57 = por %p55, %p56
    %p59 = scmp.ne.s32.totalorder %s42, %s58
    %p60 = scmp.eq.s32.totalorder %s20, 0
    %p61 = por %p59, %p60
    %s63 = sadd.s32 %s62, 1
    %p66 = scmp.eq.s32.totalorder %s14, 1
    %p67 = scmp.ne.s32.totalorder %s62, %s64
    %p68 = scmp.eq.s32.totalorder %s14, 0
    %p69 = por %p67, %p68
    %p70 = scmp.ne.s32.totalorder %s62, %s64
    %p71 = scmp.eq.s32.totalorder %s19, 1
    %p72 = por %p70, %p71
    %p73 = scmp.ne.s32.totalorder %s64, %s65
    %p74 = scmp.eq.s32.totalorder %s19, 0
    %p75 = por %p73, %p74
    %p76 = scmp.ne.s32.totalorder %s64, %s65
    %p77 = scmp.eq.s32.totalorder %s20, 1
    %p78 = por %p76, %p77
    %p80 = scmp.ne.s32.totalorder %s65, %s79
    %p81 = scmp.eq.s32.totalorder %s20, 0
    %p82 = por %p80, %p81
    %s84 = sadd.s32 %s83, 1
    %p87 = scmp.eq.s32.totalorder %s14, 1
    %p88 = scmp.ne.s32.totalorder %s83, %s85
    %p89 = scmp.eq.s32.totalorder %s14, 0
    %p90 = por %p88, %p89
    %p91 = scmp.ne.s32.totalorder %s83, %s85
    %p92 = scmp.eq.s32.totalorder %s19, 1
    %p93 = por %p91, %p92
    %p94 = scmp.ne.s32.totalorder %s85, %s86
    %p95 = scmp.eq.s32.totalorder %s19, 0
    %p96 = por %p94, %p95
    %p97 = scmp.ne.s32.totalorder %s85, %s86
    %p98 = scmp.eq.s32.totalorder %s20, 1
    %p99 = por %p97, %p98
    %p101 = scmp.ne.s32.totalorder %s86, %s100
    %p102 = scmp.eq.s32.totalorder %s20, 0
    %p103 = por %p101, %p102
    %s105 = sadd.s32 %s104, 1
    %p108 = scmp.eq.s32.totalorder %s14, 1
    %p109 = scmp.ne.s32.totalorder %s104, %s106
    %p110 = scmp.eq.s32.totalorder %s14, 0
    %p111 = por %p109, %p110
    %p112 = scmp.ne.s32.totalorder %s104, %s106
    %p113 = scmp.eq.s32.totalorder %s19, 1
    %p114 = por %p112, %p113
    %p115 = scmp.ne.s32.totalorder %s106, %s107
    %p116 = scmp.eq.s32.totalorder %s19, 0
    %p117 = por %p115, %p116
    %p118 = scmp.ne.s32.totalorder %s106, %s107
    %p119 = scmp.eq.s32.totalorder %s20, 1
    %p120 = por %p118, %p119
    %p122 = scmp.ne.s32.totalorder %s107, %s121
    %p123 = scmp.eq.s32.totalorder %s20, 0
    %p124 = por %p122, %p123
    %s126 = sadd.s32 %s125, 1
    %p129 = scmp.eq.s32.totalorder %s14, 1
    %p130 = scmp.ne.s32.totalorder %s125, %s127
    %p131 = scmp.eq.s32.totalorder %s14, 0
    %p132 = por %p130, %p131
    %p133 = scmp.ne.s32.totalorder %s125, %s127
    %p134 = scmp.eq.s32.totalorder %s19, 1
    %p135 = por %p133, %p134
    %p136 = scmp.ne.s32.totalorder %s127, %s128
    %p137 = scmp.eq.s32.totalorder %s19, 0
    %p138 = por %p136, %p137
    %p139 = scmp.ne.s32.totalorder %s127, %s128
    %p140 = scmp.eq.s32.totalorder %s20, 1
    %p141 = por %p139, %p140
    %p143 = scmp.ne.s32.totalorder %s128, %s142
    %p144 = scmp.eq.s32.totalorder %s20, 0
    %p145 = por %p143, %p144
    %s146 = ssub.s32 %s21, %s33
    %s147 = ssub.s32 %s22, %s29
    %s148 = sor.u32 %s146, %s147
    %p149 = scmp.eq.s32.totalorder %s148, 0
    %s151 = sadd.s32 %s150, 1
    %s152 = scalar_select %p149, %s150, %s151
    %p155 = pneg %p149
    %p156 = scmp.eq.s32.totalorder %s14, 1
    %p157 = por %p155, %p156
    %p158 = scmp.ne.s32.totalorder %s150, %s153
    %p159 = scmp.eq.s32.totalorder %s14, 0
    %p160 = por %p158, %p159
    %p161 = scmp.ne.s32.totalorder %s150, %s153
    %p162 = scmp.eq.s32.totalorder %s19, 1
    %p163 = por %p161, %p162
    %p164 = scmp.ne.s32.totalorder %s153, %s154
    %p165 = scmp.eq.s32.totalorder %s19, 0
    %p166 = por %p164, %p165
    %p167 = scmp.ne.s32.totalorder %s153, %s154
    %p168 = scmp.eq.s32.totalorder %s20, 1
    %p169 = por %p167, %p168
    %p171 = scmp.ne.s32.totalorder %s154, %s170
    %p172 = scmp.eq.s32.totalorder %s20, 0
    %p173 = por %p171, %p172
    %s174 = ssub.s32 %s21, %s33
    %s175 = ssub.s32 %s22, %s29
    %s176 = sor.u32 %s174, %s175
    %p177 = scmp.eq.s32.totalorder %s176, 0
    %s179 = sadd.s32 %s178, 1
    %s180 = scalar_select %p177, %s178, %s179
    %p183 = pneg %p177
    %p184 = scmp.eq.s32.totalorder %s14, 1
    %p185 = por %p183, %p184
    %p186 = scmp.ne.s32.totalorder %s178, %s181
    %p187 = scmp.eq.s32.totalorder %s14, 0
    %p188 = por %p186, %p187
    %p189 = scmp.ne.s32.totalorder %s178, %s181
    %p190 = scmp.eq.s32.totalorder %s19, 1
    %p191 = por %p189, %p190
    %p192 = scmp.ne.s32.totalorder %s181, %s182
    %p193 = scmp.eq.s32.totalorder %s19, 0
    %p194 = por %p192, %p193
    %p195 = scmp.ne.s32.totalorder %s181, %s182
    %p196 = scmp.eq.s32.totalorder %s20, 1
    %p197 = por %p195, %p196
    %p199 = scmp.ne.s32.totalorder %s182, %s198
    %p200 = scmp.eq.s32.totalorder %s20, 0
    %p201 = por %p199, %p200
    %s202 = ssub.s32 %s21, %s33
    %s203 = ssub.s32 %s22, %s29
    %s204 = sor.u32 %s202, %s203
    %p205 = scmp.eq.s32.totalorder %s204, 0
    %s207 = sadd.s32 %s206, 1
    %s208 = scalar_select %p205, %s206, %s207
    %p211 = pneg %p205
    %p212 = scmp.eq.s32.totalorder %s14, 1
    %p213 = por %p211, %p212
    %p214 = scmp.ne.s32.totalorder %s206, %s209
    %p215 = scmp.eq.s32.totalorder %s14, 0
    %p216 = por %p214, %p215
    %p217 = scmp.ne.s32.totalorder %s206, %s209
    %p218 = scmp.eq.s32.totalorder %s19, 1
    %p219 = por %p217, %p218
    %p220 = scmp.ne.s32.totalorder %s209, %s210
    %p221 = scmp.eq.s32.totalorder %s19, 0
    %p222 = por %p220, %p221
    %p223 = scmp.ne.s32.totalorder %s209, %s210
    %p224 = scmp.eq.s32.totalorder %s20, 1
    %p225 = por %p223, %p224
    %p227 = scmp.ne.s32.totalorder %s210, %s226
    %p228 = scmp.eq.s32.totalorder %s20, 0
    %p229 = por %p227, %p228
    %p230 = scmp.le.s32.totalorder 1, %s14
    %p231 = scmp.lt.s32.totalorder %s14, 3
    %p232 = pnand %p230, %p231
    %p233 = pneg %p232
    // Predicated region
    $region9: #{tpu_custom_call.1} parent=5 // pred_check
      _
    $region10: #{tpu_custom_call.1} parent=5 // pred_check_branch
      %235 = sbr.rel (%p232) target = $region12
    $region11: #{tpu_custom_call.1} parent=5 // pred_region
      %s236 = ssub.s32 %s14, 1
      // Predicated region
      $region13: #{tpu_custom_call.1} parent=11 // pred_check
        %p237 = pneg %p75
      $region14: #{tpu_custom_call.1} parent=11 // pred_check_branch
        %239 = sbr.rel (%p237) target = $region16
      $region15: #{tpu_custom_call.1} parent=11 // pred_region
        _
      $region16: #{tpu_custom_call.1} parent=11 // pred_fallthru
        _
      // Predicated region
      $region17: #{tpu_custom_call.1} parent=11 // pred_check
        %p240 = pneg %p96
      $region18: #{tpu_custom_call.1} parent=11 // pred_check_branch
        %242 = sbr.rel (%p240) target = $region20
      $region19: #{tpu_custom_call.1} parent=11 // pred_region
        _
      $region20: #{tpu_custom_call.1} parent=11 // pred_fallthru
        _
      // Predicated region
      $region21: #{tpu_custom_call.1} parent=11 // pred_check
        %p243 = pneg %p117
      $region22: #{tpu_custom_call.1} parent=11 // pred_check_branch
        %245 = sbr.rel (%p243) target = $region24
      $region23: #{tpu_custom_call.1} parent=11 // pred_region
        _
      $region24: #{tpu_custom_call.1} parent=11 // pred_fallthru
        _
      // Predicated region
      $region25: #{tpu_custom_call.1} parent=11 // pred_check
        %p246 = pneg %p138
      $region26: #{tpu_custom_call.1} parent=11 // pred_check_branch
        %248 = sbr.rel (%p246) target = $region28
      $region27: #{tpu_custom_call.1} parent=11 // pred_region
        _
      $region28: #{tpu_custom_call.1} parent=11 // pred_fallthru
        _
    $region12: #{tpu_custom_call.1} parent=5 // pred_fallthru
      _
    %p249 = scmp.lt.s32.totalorder %s14, 2
    // Predicated region
    $region29: #{tpu_custom_call.1} parent=5 // pred_check
      %p250 = pneg %p249
    $region30: #{tpu_custom_call.1} parent=5 // pred_check_branch
      %252 = sbr.rel (%p250) target = $region32
    $region31: #{tpu_custom_call.1} parent=5 // pred_region
      // Predicated region
      $region33: #{tpu_custom_call.1} parent=31 // pred_check
        %p253 = pneg %p48
      $region34: #{tpu_custom_call.1} parent=31 // pred_check_branch
        %255 = sbr.rel (%p253) target = $region36
      $region35: #{tpu_custom_call.1} parent=31 // pred_region
        %s256 = smul.u32 32, %s22
        %p257 = scmp.lt.s32.totalorder %s21, 1
        %s258 = scalar_select %p257, %s21, 1
        %p259 = scmp.lt.s32.totalorder %s256, 31
        %s260 = scalar_select %p259, %s256, 31
        %s261 = smul.addr %s258, 32
        %s262 = sadd.s32 %s260, %s261
        %s263 = smul.addr %s262, 4
        %s264 = scalar_lea.vmem %s0, %s263
        %s265 = smul.u32 32, %s22
      $region36: #{tpu_custom_call.1} parent=31 // pred_fallthru
        _
    $region32: #{tpu_custom_call.1} parent=5 // pred_fallthru
      _
    %p266 = scmp.le.s32.totalorder 1, %s14
    %p267 = scmp.lt.s32.totalorder %s14, 3
    %p268 = pnand %p266, %p267
    %p269 = pneg %p268
    // Predicated region
    $region37: #{tpu_custom_call.1} parent=5 // pred_check
      _
    $region38: #{tpu_custom_call.1} parent=5 // pred_check_branch
      %271 = sbr.rel (%p268) target = $region40
    $region39: #{tpu_custom_call.1} parent=5 // pred_region
      %s272 = ssub.s32 %s14, 1
      %s273 = smul.u32 32, %s24
      %p274 = scmp.lt.s32.totalorder %s23, 1
      %s275 = scalar_select %p274, %s23, 1
      %p276 = scmp.lt.s32.totalorder %s273, 31
      %s277 = scalar_select %p276, %s273, 31
      %s278 = smul.addr %s275, 32
      %s279 = sadd.s32 %s277, %s278
      %s280 = smul.addr %s279, 4
      %s281 = scalar_lea.vmem %s0, %s280
      %p282 = pneg %p54
      %p283 = pneg %p51
      %p284 = pneg %p75
      %p285 = pneg %p72
      %p286 = pneg %p96
      %p287 = pneg %p93
      %p288 = pneg %p117
      %p289 = pneg %p114
      %p290 = pneg %p138
      %p291 = pneg %p135
      %p292 = pneg %p166
      %p293 = pneg %p163
      %s294 = smul.u32 32, %s24
      %p295 = scmp.lt.s32.totalorder %s23, 1
      %s296 = scalar_select %p295, %s23, 1
      %p297 = scmp.lt.s32.totalorder %s294, 31
      %s298 = scalar_select %p297, %s294, 31
      %s299 = smul.addr %s296, 32
      %s300 = sadd.s32 %s298, %s299
      %s301 = smul.addr %s300, 4
      %s302 = scalar_lea.vmem %s5, %s301
      %p303 = pneg %p194
      %p304 = pneg %p191
      %s305 = smul.u32 32, %s24
      %p306 = scmp.lt.s32.totalorder %s23, 1
      %s307 = scalar_select %p306, %s23, 1
      %p308 = scmp.lt.s32.totalorder %s305, 31
      %s309 = scalar_select %p308, %s305, 31
      %s310 = smul.addr %s307, 32
      %s311 = sadd.s32 %s309, %s310
      %s312 = smul.addr %s311, 4
      %s313 = scalar_lea.vmem %s6, %s312
      %p314 = pneg %p222
      %p315 = pneg %p219
      %s316 = smul.u32 32, %s24
      %p317 = scmp.lt.s32.totalorder %s23, 1
      %s318 = scalar_select %p317, %s23, 1
      %p319 = scmp.lt.s32.totalorder %s316, 31
      %s320 = scalar_select %p319, %s316, 31
      %s321 = smul.addr %s318, 32
      %s322 = sadd.s32 %s320, %s321
      %s323 = smul.addr %s322, 4
      %s324 = scalar_lea.vmem %s7, %s323
      %s325 = smul.u32 32, %s24
      %p326 = scmp.lt.s32.totalorder %s23, 1
      %s327 = scalar_select %p326, %s23, 1
      %p328 = scmp.lt.s32.totalorder %s325, 31
      %s329 = scalar_select %p328, %s325, 31
      %s330 = smul.addr %s327, 32
      %s331 = sadd.s32 %s329, %s330
      %s332 = smul.addr %s331, 4
      %s333 = scalar_lea.vmem %s0, %s332
      %s334 = smul.u32 32, %s24
      %s335 = smul.u32 32, %s24
      %p336 = scmp.lt.s32.totalorder %s23, 1
      %s337 = scalar_select %p336, %s23, 1
      %p338 = scmp.lt.s32.totalorder %s335, 31
      %s339 = scalar_select %p338, %s335, 31
      %s340 = smul.addr %s337, 32
      %s341 = sadd.s32 %s339, %s340
      %s342 = smul.addr %s341, 4
      %s343 = scalar_lea.vmem %s5, %s342
      %s344 = smul.u32 32, %s24
      %s345 = smul.u32 32, %s24
      %p346 = scmp.lt.s32.totalorder %s23, 1
      %s347 = scalar_select %p346, %s23, 1
      %p348 = scmp.lt.s32.totalorder %s345, 31
      %s349 = scalar_select %p348, %s345, 31
      %s350 = smul.addr %s347, 32
      %s351 = sadd.s32 %s349, %s350
      %s352 = smul.addr %s351, 4
      %s353 = scalar_lea.vmem %s6, %s352
      %s354 = smul.u32 32, %s24
      %s355 = smul.u32 32, %s24
      %p356 = scmp.lt.s32.totalorder %s23, 1
      %s357 = scalar_select %p356, %s23, 1
      %p358 = scmp.lt.s32.totalorder %s355, 31
      %s359 = scalar_select %p358, %s355, 31
      %s360 = smul.addr %s357, 32
      %s361 = sadd.s32 %s359, %s360
      %s362 = smul.addr %s361, 4
      %s363 = scalar_lea.vmem %s7, %s362
      %s364 = smul.u32 32, %s24
      %v366 = vld [vmem:[%s333] sm:$0xf]
      %v367 = vld [vmem:[%s333 + $0x4] sm:$0xf]
      %v368 = vld [vmem:[%s333 + $0x8] sm:$0xf]
      %v369 = vld [vmem:[%s333 + $0xc] sm:$0xf]
      %v370 = vld [vmem:[%s333 + $0x10] sm:$0xf]
      %v371 = vld [vmem:[%s333 + $0x14] sm:$0xf]
      %v372 = vld [vmem:[%s333 + $0x18] sm:$0xf]
      %v373 = vld [vmem:[%s333 + $0x1c] sm:$0xf]
      %v374 = vld [vmem:[%s333 + $0x20] sm:$0xf]
      %v375 = vld [vmem:[%s333 + $0x24] sm:$0xf]
      %v376 = vld [vmem:[%s333 + $0x28] sm:$0xf]
      %v377 = vld [vmem:[%s333 + $0x2c] sm:$0xf]
      %v378 = vld [vmem:[%s333 + $0x30] sm:$0xf]
      %v379 = vld [vmem:[%s333 + $0x34] sm:$0xf]
      %v380 = vld [vmem:[%s333 + $0x38] sm:$0xf]
      %v381 = vld [vmem:[%s333 + $0x3c] sm:$0xf]
      %v382 = vld [vmem:[%s333 + $0x40] sm:$0xf]
      %v383 = vld [vmem:[%s333 + $0x44] sm:$0xf]
      %v384 = vld [vmem:[%s333 + $0x48] sm:$0xf]
      %v385 = vld [vmem:[%s333 + $0x4c] sm:$0xf]
      %v386 = vld [vmem:[%s333 + $0x50] sm:$0xf]
      %v387 = vld [vmem:[%s333 + $0x54] sm:$0xf]
      %v388 = vld [vmem:[%s333 + $0x58] sm:$0xf]
      %v389 = vld [vmem:[%s333 + $0x5c] sm:$0xf]
      %v390 = vld [vmem:[%s333 + $0x60] sm:$0xf]
      %v391 = vld [vmem:[%s333 + $0x64] sm:$0xf]
      %v392 = vld [vmem:[%s333 + $0x68] sm:$0xf]
      %v393 = vld [vmem:[%s333 + $0x6c] sm:$0xf]
      %v394 = vld [vmem:[%s333 + $0x70] sm:$0xf]
      %v395 = vld [vmem:[%s333 + $0x74] sm:$0xf]
      %v396 = vld [vmem:[%s333 + $0x78] sm:$0xf]
      %v397 = vld [vmem:[%s333 + $0x7c] sm:$0xf]
      %v398 = vunpack.c.l.bf16 %v366
      %v399 = vunpack.c.l.bf16 %v367
      %v400 = vunpack.c.l.bf16 %v368
      %v401 = vunpack.c.l.bf16 %v369
      %v402 = vunpack.c.l.bf16 %v370
      %v403 = vunpack.c.l.bf16 %v371
      %v404 = vunpack.c.l.bf16 %v372
      %v405 = vunpack.c.l.bf16 %v373
      %v406 = vunpack.c.l.bf16 %v374
      %v407 = vunpack.c.l.bf16 %v375
      %v408 = vunpack.c.l.bf16 %v376
      %v409 = vunpack.c.l.bf16 %v377
      %v410 = vunpack.c.l.bf16 %v378
      %v411 = vunpack.c.l.bf16 %v379
      %v412 = vunpack.c.l.bf16 %v380
      %v413 = vunpack.c.l.bf16 %v381
      %v414 = vunpack.c.l.bf16 %v382
      %v415 = vunpack.c.l.bf16 %v383
      %v416 = vunpack.c.l.bf16 %v384
      %v417 = vunpack.c.l.bf16 %v385
      %v418 = vunpack.c.l.bf16 %v386
      %v419 = vunpack.c.l.bf16 %v387
      %v420 = vunpack.c.l.bf16 %v388
      %v421 = vunpack.c.l.bf16 %v389
      %v422 = vunpack.c.l.bf16 %v390
      %v423 = vunpack.c.l.bf16 %v391
      %v424 = vunpack.c.l.bf16 %v392
      %v425 = vunpack.c.l.bf16 %v393
      %v426 = vunpack.c.l.bf16 %v394
      %v427 = vunpack.c.l.bf16 %v395
      %v428 = vunpack.c.l.bf16 %v396
      %v429 = vunpack.c.l.bf16 %v397
      %vm430 = vcmask 523264
      %v431 = vsel %vm430, %v398, 0.0
      %432 = vadd.xlane.f32.xlu0 %v431
      %v433 = vpop.xlane.xlu0 %432
      %v434 = vsel %vm430, %v399, 0.0
      %435 = vadd.xlane.f32.xlu0 %v434
      %v436 = vpop.xlane.xlu0 %435
      %v437 = vsel %vm430, %v400, 0.0
      %438 = vadd.xlane.f32.xlu0 %v437
      %v439 = vpop.xlane.xlu0 %438
      %v440 = vsel %vm430, %v401, 0.0
      %441 = vadd.xlane.f32.xlu0 %v440
      %v442 = vpop.xlane.xlu0 %441
      %v443 = vsel %vm430, %v402, 0.0
      %444 = vadd.xlane.f32.xlu0 %v443
      %v445 = vpop.xlane.xlu0 %444
      %v446 = vsel %vm430, %v403, 0.0
      %447 = vadd.xlane.f32.xlu0 %v446
      %v448 = vpop.xlane.xlu0 %447
      %v449 = vsel %vm430, %v404, 0.0
      %450 = vadd.xlane.f32.xlu0 %v449
      %v451 = vpop.xlane.xlu0 %450
      %v452 = vsel %vm430, %v405, 0.0
      %453 = vadd.xlane.f32.xlu0 %v452
      %v454 = vpop.xlane.xlu0 %453
      %v455 = vsel %vm430, %v406, 0.0
      %456 = vadd.xlane.f32.xlu0 %v455
      %v457 = vpop.xlane.xlu0 %456
      %v458 = vsel %vm430, %v407, 0.0
      %459 = vadd.xlane.f32.xlu0 %v458
      %v460 = vpop.xlane.xlu0 %459
      %v461 = vsel %vm430, %v408, 0.0
      %462 = vadd.xlane.f32.xlu0 %v461
      %v463 = vpop.xlane.xlu0 %462
      %v464 = vsel %vm430, %v409, 0.0
      %465 = vadd.xlane.f32.xlu0 %v464
      %v466 = vpop.xlane.xlu0 %465
      %v467 = vsel %vm430, %v410, 0.0
      %468 = vadd.xlane.f32.xlu0 %v467
      %v469 = vpop.xlane.xlu0 %468
      %v470 = vsel %vm430, %v411, 0.0
      %471 = vadd.xlane.f32.xlu0 %v470
      %v472 = vpop.xlane.xlu0 %471
      %v473 = vsel %vm430, %v412, 0.0
      %474 = vadd.xlane.f32.xlu0 %v473
      %v475 = vpop.xlane.xlu0 %474
      %v476 = vsel %vm430, %v413, 0.0
      %477 = vadd.xlane.f32.xlu0 %v476
      %v478 = vpop.xlane.xlu0 %477
      %v479 = vsel %vm430, %v414, 0.0
      %480 = vadd.xlane.f32.xlu0 %v479
      %v481 = vpop.xlane.xlu0 %480
      %v482 = vsel %vm430, %v415, 0.0
      %483 = vadd.xlane.f32.xlu0 %v482
      %v484 = vpop.xlane.xlu0 %483
      %v485 = vsel %vm430, %v416, 0.0
      %486 = vadd.xlane.f32.xlu0 %v485
      %v487 = vpop.xlane.xlu0 %486
      %v488 = vsel %vm430, %v417, 0.0
      %489 = vadd.xlane.f32.xlu0 %v488
      %v490 = vpop.xlane.xlu0 %489
      %v491 = vsel %vm430, %v418, 0.0
      %492 = vadd.xlane.f32.xlu0 %v491
      %v493 = vpop.xlane.xlu0 %492
      %v494 = vsel %vm430, %v419, 0.0
      %495 = vadd.xlane.f32.xlu0 %v494
      %v496 = vpop.xlane.xlu0 %495
      %v497 = vsel %vm430, %v420, 0.0
      %498 = vadd.xlane.f32.xlu0 %v497
      %v499 = vpop.xlane.xlu0 %498
      %v500 = vsel %vm430, %v421, 0.0
      %501 = vadd.xlane.f32.xlu0 %v500
      %v502 = vpop.xlane.xlu0 %501
      %v503 = vsel %vm430, %v422, 0.0
      %504 = vadd.xlane.f32.xlu0 %v503
      %v505 = vpop.xlane.xlu0 %504
      %v506 = vsel %vm430, %v423, 0.0
      %507 = vadd.xlane.f32.xlu0 %v506
      %v508 = vpop.xlane.xlu0 %507
      %v509 = vsel %vm430, %v424, 0.0
      %510 = vadd.xlane.f32.xlu0 %v509
      %v511 = vpop.xlane.xlu0 %510
      %v512 = vsel %vm430, %v425, 0.0
      %513 = vadd.xlane.f32.xlu0 %v512
      %v514 = vpop.xlane.xlu0 %513
      %v515 = vsel %vm430, %v426, 0.0
      %516 = vadd.xlane.f32.xlu0 %v515
      %v517 = vpop.xlane.xlu0 %516
      %v518 = vsel %vm430, %v427, 0.0
      %519 = vadd.xlane.f32.xlu0 %v518
      %v520 = vpop.xlane.xlu0 %519
      %v521 = vsel %vm430, %v428, 0.0
      %522 = vadd.xlane.f32.xlu0 %v521
      %v523 = vpop.xlane.xlu0 %522
      %v524 = vsel %vm430, %v429, 0.0
      %525 = vadd.xlane.f32.xlu0 %v524
      %v526 = vpop.xlane.xlu0 %525
      %v527 = vrcp.pop 64.0
      %v528 = vmul.f32 64.0, %v527
      %v529 = vsub.f32 1.0, %v528
      %v530 = vmul.f32 %v527, %v529
      %v531 = vadd.f32 %v527, %v530
      %vm532 = vweird.f32 %v527
      %v533 = vsel %vm532, %v527, %v531
      %v534 = vmul.f32 %v433, %v533
      %v535 = vmul.f32 %v436, %v533
      %v536 = vmul.f32 %v439, %v533
      %v537 = vmul.f32 %v442, %v533
      %v538 = vmul.f32 %v445, %v533
      %v539 = vmul.f32 %v448, %v533
      %v540 = vmul.f32 %v451, %v533
      %v541 = vmul.f32 %v454, %v533
      %v542 = vmul.f32 %v457, %v533
      %v543 = vmul.f32 %v460, %v533
      %v544 = vmul.f32 %v463, %v533
      %v545 = vmul.f32 %v466, %v533
      %v546 = vmul.f32 %v469, %v533
      %v547 = vmul.f32 %v472, %v533
      %v548 = vmul.f32 %v475, %v533
      %v549 = vmul.f32 %v478, %v533
      %v550 = vmul.f32 %v481, %v533
      %v551 = vmul.f32 %v484, %v533
      %v552 = vmul.f32 %v487, %v533
      %v553 = vmul.f32 %v490, %v533
      %v554 = vmul.f32 %v493, %v533
      %v555 = vmul.f32 %v496, %v533
      %v556 = vmul.f32 %v499, %v533
      %v557 = vmul.f32 %v502, %v533
      %v558 = vmul.f32 %v505, %v533
      %v559 = vmul.f32 %v508, %v533
      %v560 = vmul.f32 %v511, %v533
      %v561 = vmul.f32 %v514, %v533
      %v562 = vmul.f32 %v517, %v533
      %v563 = vmul.f32 %v520, %v533
      %v564 = vmul.f32 %v523, %v533
      %v565 = vmul.f32 %v526, %v533
      %v566 = vsub.f32 %v398, %v534
      %v567 = vsub.f32 %v399, %v535
      %v568 = vsub.f32 %v400, %v536
      %v569 = vsub.f32 %v401, %v537
      %v570 = vsub.f32 %v402, %v538
      %v571 = vsub.f32 %v403, %v539
      %v572 = vsub.f32 %v404, %v540
      %v573 = vsub.f32 %v405, %v541
      %v574 = vsub.f32 %v406, %v542
      %v575 = vsub.f32 %v407, %v543
      %v576 = vsub.f32 %v408, %v544
      %v577 = vsub.f32 %v409, %v545
      %v578 = vsub.f32 %v410, %v546
      %v579 = vsub.f32 %v411, %v547
      %v580 = vsub.f32 %v412, %v548
      %v581 = vsub.f32 %v413, %v549
      %v582 = vsub.f32 %v414, %v550
      %v583 = vsub.f32 %v415, %v551
      %v584 = vsub.f32 %v416, %v552
      %v585 = vsub.f32 %v417, %v553
      %v586 = vsub.f32 %v418, %v554
      %v587 = vsub.f32 %v419, %v555
      %v588 = vsub.f32 %v420, %v556
      %v589 = vsub.f32 %v421, %v557
      %v590 = vsub.f32 %v422, %v558
      %v591 = vsub.f32 %v423, %v559
      %v592 = vsub.f32 %v424, %v560
      %v593 = vsub.f32 %v425, %v561
      %v594 = vsub.f32 %v426, %v562
      %v595 = vsub.f32 %v427, %v563
      %v596 = vsub.f32 %v428, %v564
      %v597 = vsub.f32 %v429, %v565
      %v598 = vmul.f32 %v566, %v566
      %v599 = vmul.f32 %v567, %v567
      %v600 = vmul.f32 %v568, %v568
      %v601 = vmul.f32 %v569, %v569
      %v602 = vmul.f32 %v570, %v570
      %v603 = vmul.f32 %v571, %v571
      %v604 = vmul.f32 %v572, %v572
      %v605 = vmul.f32 %v573, %v573
      %v606 = vmul.f32 %v574, %v574
      %v607 = vmul.f32 %v575, %v575
      %v608 = vmul.f32 %v576, %v576
      %v609 = vmul.f32 %v577, %v577
      %v610 = vmul.f32 %v578, %v578
      %v611 = vmul.f32 %v579, %v579
      %v612 = vmul.f32 %v580, %v580
      %v613 = vmul.f32 %v581, %v581
      %v614 = vmul.f32 %v582, %v582
      %v615 = vmul.f32 %v583, %v583
      %v616 = vmul.f32 %v584, %v584
      %v617 = vmul.f32 %v585, %v585
      %v618 = vmul.f32 %v586, %v586
      %v619 = vmul.f32 %v587, %v587
      %v620 = vmul.f32 %v588, %v588
      %v621 = vmul.f32 %v589, %v589
      %v622 = vmul.f32 %v590, %v590
      %v623 = vmul.f32 %v591, %v591
      %v624 = vmul.f32 %v592, %v592
      %v625 = vmul.f32 %v593, %v593
      %v626 = vmul.f32 %v594, %v594
      %v627 = vmul.f32 %v595, %v595
      %v628 = vmul.f32 %v596, %v596
      %v629 = vmul.f32 %v597, %v597
      %v630 = vsel %vm430, %v598, 0.0
      %631 = vadd.xlane.f32.xlu0 %v630
      %v632 = vpop.xlane.xlu0 %631
      %v633 = vsel %vm430, %v599, 0.0
      %634 = vadd.xlane.f32.xlu0 %v633
      %v635 = vpop.xlane.xlu0 %634
      %v636 = vsel %vm430, %v600, 0.0
      %637 = vadd.xlane.f32.xlu0 %v636
      %v638 = vpop.xlane.xlu0 %637
      %v639 = vsel %vm430, %v601, 0.0
      %640 = vadd.xlane.f32.xlu0 %v639
      %v641 = vpop.xlane.xlu0 %640
      %v642 = vsel %vm430, %v602, 0.0
      %643 = vadd.xlane.f32.xlu0 %v642
      %v644 = vpop.xlane.xlu0 %643
      %v645 = vsel %vm430, %v603, 0.0
      %646 = vadd.xlane.f32.xlu0 %v645
      %v647 = vpop.xlane.xlu0 %646
      %v648 = vsel %vm430, %v604, 0.0
      %649 = vadd.xlane.f32.xlu0 %v648
      %v650 = vpop.xlane.xlu0 %649
      %v651 = vsel %vm430, %v605, 0.0
      %652 = vadd.xlane.f32.xlu0 %v651
      %v653 = vpop.xlane.xlu0 %652
      %v654 = vsel %vm430, %v606, 0.0
      %655 = vadd.xlane.f32.xlu0 %v654
      %v656 = vpop.xlane.xlu0 %655
      %v657 = vsel %vm430, %v607, 0.0
      %658 = vadd.xlane.f32.xlu0 %v657
      %v659 = vpop.xlane.xlu0 %658
      %v660 = vsel %vm430, %v608, 0.0
      %661 = vadd.xlane.f32.xlu0 %v660
      %v662 = vpop.xlane.xlu0 %661
      %v663 = vsel %vm430, %v609, 0.0
      %664 = vadd.xlane.f32.xlu0 %v663
      %v665 = vpop.xlane.xlu0 %664
      %v666 = vsel %vm430, %v610, 0.0
      %667 = vadd.xlane.f32.xlu0 %v666
      %v668 = vpop.xlane.xlu0 %667
      %v669 = vsel %vm430, %v611, 0.0
      %670 = vadd.xlane.f32.xlu0 %v669
      %v671 = vpop.xlane.xlu0 %670
      %v672 = vsel %vm430, %v612, 0.0
      %673 = vadd.xlane.f32.xlu0 %v672
      %v674 = vpop.xlane.xlu0 %673
      %v675 = vsel %vm430, %v613, 0.0
      %676 = vadd.xlane.f32.xlu0 %v675
      %v677 = vpop.xlane.xlu0 %676
      %v678 = vsel %vm430, %v614, 0.0
      %679 = vadd.xlane.f32.xlu0 %v678
      %v680 = vpop.xlane.xlu0 %679
      %v681 = vsel %vm430, %v615, 0.0
      %682 = vadd.xlane.f32.xlu0 %v681
      %v683 = vpop.xlane.xlu0 %682
      %v684 = vsel %vm430, %v616, 0.0
      %685 = vadd.xlane.f32.xlu0 %v684
      %v686 = vpop.xlane.xlu0 %685
      %v687 = vsel %vm430, %v617, 0.0
      %688 = vadd.xlane.f32.xlu0 %v687
      %v689 = vpop.xlane.xlu0 %688
      %v690 = vsel %vm430, %v618, 0.0
      %691 = vadd.xlane.f32.xlu0 %v690
      %v692 = vpop.xlane.xlu0 %691
      %v693 = vsel %vm430, %v619, 0.0
      %694 = vadd.xlane.f32.xlu0 %v693
      %v695 = vpop.xlane.xlu0 %694
      %v696 = vsel %vm430, %v620, 0.0
      %697 = vadd.xlane.f32.xlu0 %v696
      %v698 = vpop.xlane.xlu0 %697
      %v699 = vsel %vm430, %v621, 0.0
      %700 = vadd.xlane.f32.xlu0 %v699
      %v701 = vpop.xlane.xlu0 %700
      %v702 = vsel %vm430, %v622, 0.0
      %703 = vadd.xlane.f32.xlu0 %v702
      %v704 = vpop.xlane.xlu0 %703
      %v705 = vsel %vm430, %v623, 0.0
      %706 = vadd.xlane.f32.xlu0 %v705
      %v707 = vpop.xlane.xlu0 %706
      %v708 = vsel %vm430, %v624, 0.0
      %709 = vadd.xlane.f32.xlu0 %v708
      %v710 = vpop.xlane.xlu0 %709
      %v711 = vsel %vm430, %v625, 0.0
      %712 = vadd.xlane.f32.xlu0 %v711
      %v713 = vpop.xlane.xlu0 %712
      %v714 = vsel %vm430, %v626, 0.0
      %715 = vadd.xlane.f32.xlu0 %v714
      %v716 = vpop.xlane.xlu0 %715
      %v717 = vsel %vm430, %v627, 0.0
      %718 = vadd.xlane.f32.xlu0 %v717
      %v719 = vpop.xlane.xlu0 %718
      %v720 = vsel %vm430, %v628, 0.0
      %721 = vadd.xlane.f32.xlu0 %v720
      %v722 = vpop.xlane.xlu0 %721
      %v723 = vsel %vm430, %v629, 0.0
      %724 = vadd.xlane.f32.xlu0 %v723
      %v725 = vpop.xlane.xlu0 %724
      %v726 = vmul.f32 %v632, %v533
      %v727 = vmul.f32 %v635, %v533
      %v728 = vmul.f32 %v638, %v533
      %v729 = vmul.f32 %v641, %v533
      %v730 = vmul.f32 %v644, %v533
      %v731 = vmul.f32 %v647, %v533
      %v732 = vmul.f32 %v650, %v533
      %v733 = vmul.f32 %v653, %v533
      %v734 = vmul.f32 %v656, %v533
      %v735 = vmul.f32 %v659, %v533
      %v736 = vmul.f32 %v662, %v533
      %v737 = vmul.f32 %v665, %v533
      %v738 = vmul.f32 %v668, %v533
      %v739 = vmul.f32 %v671, %v533
      %v740 = vmul.f32 %v674, %v533
      %v741 = vmul.f32 %v677, %v533
      %v742 = vmul.f32 %v680, %v533
      %v743 = vmul.f32 %v683, %v533
      %v744 = vmul.f32 %v686, %v533
      %v745 = vmul.f32 %v689, %v533
      %v746 = vmul.f32 %v692, %v533
      %v747 = vmul.f32 %v695, %v533
      %v748 = vmul.f32 %v698, %v533
      %v749 = vmul.f32 %v701, %v533
      %v750 = vmul.f32 %v704, %v533
      %v751 = vmul.f32 %v707, %v533
      %v752 = vmul.f32 %v710, %v533
      %v753 = vmul.f32 %v713, %v533
      %v754 = vmul.f32 %v716, %v533
      %v755 = vmul.f32 %v719, %v533
      %v756 = vmul.f32 %v722, %v533
      %v757 = vmul.f32 %v725, %v533
      %v758 = vadd.f32 %v726, 1e-06
      %v759 = vadd.f32 %v727, 1e-06
      %v760 = vadd.f32 %v728, 1e-06
      %v761 = vadd.f32 %v729, 1e-06
      %v762 = vadd.f32 %v730, 1e-06
      %v763 = vadd.f32 %v731, 1e-06
      %v764 = vadd.f32 %v732, 1e-06
      %v765 = vadd.f32 %v733, 1e-06
      %v766 = vadd.f32 %v734, 1e-06
      %v767 = vadd.f32 %v735, 1e-06
      %v768 = vadd.f32 %v736, 1e-06
      %v769 = vadd.f32 %v737, 1e-06
      %v770 = vadd.f32 %v738, 1e-06
      %v771 = vadd.f32 %v739, 1e-06
      %v772 = vadd.f32 %v740, 1e-06
      %v773 = vadd.f32 %v741, 1e-06
      %v774 = vadd.f32 %v742, 1e-06
      %v775 = vadd.f32 %v743, 1e-06
      %v776 = vadd.f32 %v744, 1e-06
      %v777 = vadd.f32 %v745, 1e-06
      %v778 = vadd.f32 %v746, 1e-06
      %v779 = vadd.f32 %v747, 1e-06
      %v780 = vadd.f32 %v748, 1e-06
      %v781 = vadd.f32 %v749, 1e-06
      %v782 = vadd.f32 %v750, 1e-06
      %v783 = vadd.f32 %v751, 1e-06
      %v784 = vadd.f32 %v752, 1e-06
      %v785 = vadd.f32 %v753, 1e-06
      %v786 = vadd.f32 %v754, 1e-06
      %v787 = vadd.f32 %v755, 1e-06
      %v788 = vadd.f32 %v756, 1e-06
      %v789 = vadd.f32 %v757, 1e-06
      %v790 = vrsqrt.pop %v758
      %v791 = vmul.f32 %v790, %v758
      %v792 = vmul.f32 %v791, %v790
      %v793 = vmul.f32 0.5, %v792
      %v794 = vsub.f32 1.5, %v793
      %v795 = vmul.f32 %v790, %v794
      %vm796 = vweird.f32 %v758
      %vm797 = vweird.f32 %v790
      %vm798 = vmor %vm796, %vm797
      %v799 = vsel %vm798, %v790, %v795
      %v800 = vrsqrt.pop %v759
      %v801 = vmul.f32 %v800, %v759
      %v802 = vmul.f32 %v801, %v800
      %v803 = vmul.f32 0.5, %v802
      %v804 = vsub.f32 1.5, %v803
      %v805 = vmul.f32 %v800, %v804
      %vm806 = vweird.f32 %v759
      %vm807 = vweird.f32 %v800
      %vm808 = vmor %vm806, %vm807
      %v809 = vsel %vm808, %v800, %v805
      %v810 = vrsqrt.pop %v760
      %v811 = vmul.f32 %v810, %v760
      %v812 = vmul.f32 %v811, %v810
      %v813 = vmul.f32 0.5, %v812
      %v814 = vsub.f32 1.5, %v813
      %v815 = vmul.f32 %v810, %v814
      %vm816 = vweird.f32 %v760
      %vm817 = vweird.f32 %v810
      %vm818 = vmor %vm816, %vm817
      %v819 = vsel %vm818, %v810, %v815
      %v820 = vrsqrt.pop %v761
      %v821 = vmul.f32 %v820, %v761
      %v822 = vmul.f32 %v821, %v820
      %v823 = vmul.f32 0.5, %v822
      %v824 = vsub.f32 1.5, %v823
      %v825 = vmul.f32 %v820, %v824
      %vm826 = vweird.f32 %v761
      %vm827 = vweird.f32 %v820
      %vm828 = vmor %vm826, %vm827
      %v829 = vsel %vm828, %v820, %v825
      %v830 = vrsqrt.pop %v762
      %v831 = vmul.f32 %v830, %v762
      %v832 = vmul.f32 %v831, %v830
      %v833 = vmul.f32 0.5, %v832
      %v834 = vsub.f32 1.5, %v833
      %v835 = vmul.f32 %v830, %v834
      %vm836 = vweird.f32 %v762
      %vm837 = vweird.f32 %v830
      %vm838 = vmor %vm836, %vm837
      %v839 = vsel %vm838, %v830, %v835
      %v840 = vrsqrt.pop %v763
      %v841 = vmul.f32 %v840, %v763
      %v842 = vmul.f32 %v841, %v840
      %v843 = vmul.f32 0.5, %v842
      %v844 = vsub.f32 1.5, %v843
      %v845 = vmul.f32 %v840, %v844
      %vm846 = vweird.f32 %v763
      %vm847 = vweird.f32 %v840
      %vm848 = vmor %vm846, %vm847
      %v849 = vsel %vm848, %v840, %v845
      %v850 = vrsqrt.pop %v764
      %v851 = vmul.f32 %v850, %v764
      %v852 = vmul.f32 %v851, %v850
      %v853 = vmul.f32 0.5, %v852
      %v854 = vsub.f32 1.5, %v853
      %v855 = vmul.f32 %v850, %v854
      %vm856 = vweird.f32 %v764
      %vm857 = vweird.f32 %v850
      %vm858 = vmor %vm856, %vm857
      %v859 = vsel %vm858, %v850, %v855
      %v860 = vrsqrt.pop %v765
      %v861 = vmul.f32 %v860, %v765
      %v862 = vmul.f32 %v861, %v860
      %v863 = vmul.f32 0.5, %v862
      %v864 = vsub.f32 1.5, %v863
      %v865 = vmul.f32 %v860, %v864
      %vm866 = vweird.f32 %v765
      %vm867 = vweird.f32 %v860
      %vm868 = vmor %vm866, %vm867
      %v869 = vsel %vm868, %v860, %v865
      %v870 = vrsqrt.pop %v766
      %v871 = vmul.f32 %v870, %v766
      %v872 = vmul.f32 %v871, %v870
      %v873 = vmul.f32 0.5, %v872
      %v874 = vsub.f32 1.5, %v873
      %v875 = vmul.f32 %v870, %v874
      %vm876 = vweird.f32 %v766
      %vm877 = vweird.f32 %v870
      %vm878 = vmor %vm876, %vm877
      %v879 = vsel %vm878, %v870, %v875
      %v880 = vrsqrt.pop %v767
      %v881 = vmul.f32 %v880, %v767
      %v882 = vmul.f32 %v881, %v880
      %v883 = vmul.f32 0.5, %v882
      %v884 = vsub.f32 1.5, %v883
      %v885 = vmul.f32 %v880, %v884
      %vm886 = vweird.f32 %v767
      %vm887 = vweird.f32 %v880
      %vm888 = vmor %vm886, %vm887
      %v889 = vsel %vm888, %v880, %v885
      %v890 = vrsqrt.pop %v768
      %v891 = vmul.f32 %v890, %v768
      %v892 = vmul.f32 %v891, %v890
      %v893 = vmul.f32 0.5, %v892
      %v894 = vsub.f32 1.5, %v893
      %v895 = vmul.f32 %v890, %v894
      %vm896 = vweird.f32 %v768
      %vm897 = vweird.f32 %v890
      %vm898 = vmor %vm896, %vm897
      %v899 = vsel %vm898, %v890, %v895
      %v900 = vrsqrt.pop %v769
      %v901 = vmul.f32 %v900, %v769
      %v902 = vmul.f32 %v901, %v900
      %v903 = vmul.f32 0.5, %v902
      %v904 = vsub.f32 1.5, %v903
      %v905 = vmul.f32 %v900, %v904
      %vm906 = vweird.f32 %v769
      %vm907 = vweird.f32 %v900
      %vm908 = vmor %vm906, %vm907
      %v909 = vsel %vm908, %v900, %v905
      %v910 = vrsqrt.pop %v770
      %v911 = vmul.f32 %v910, %v770
      %v912 = vmul.f32 %v911, %v910
      %v913 = vmul.f32 0.5, %v912
      %v914 = vsub.f32 1.5, %v913
      %v915 = vmul.f32 %v910, %v914
      %vm916 = vweird.f32 %v770
      %vm917 = vweird.f32 %v910
      %vm918 = vmor %vm916, %vm917
      %v919 = vsel %vm918, %v910, %v915
      %v920 = vrsqrt.pop %v771
      %v921 = vmul.f32 %v920, %v771
      %v922 = vmul.f32 %v921, %v920
      %v923 = vmul.f32 0.5, %v922
      %v924 = vsub.f32 1.5, %v923
      %v925 = vmul.f32 %v920, %v924
      %vm926 = vweird.f32 %v771
      %vm927 = vweird.f32 %v920
      %vm928 = vmor %vm926, %vm927
      %v929 = vsel %vm928, %v920, %v925
      %v930 = vrsqrt.pop %v772
      %v931 = vmul.f32 %v930, %v772
      %v932 = vmul.f32 %v931, %v930
      %v933 = vmul.f32 0.5, %v932
      %v934 = vsub.f32 1.5, %v933
      %v935 = vmul.f32 %v930, %v934
      %vm936 = vweird.f32 %v772
      %vm937 = vweird.f32 %v930
      %vm938 = vmor %vm936, %vm937
      %v939 = vsel %vm938, %v930, %v935
      %v940 = vrsqrt.pop %v773
      %v941 = vmul.f32 %v940, %v773
      %v942 = vmul.f32 %v941, %v940
      %v943 = vmul.f32 0.5, %v942
      %v944 = vsub.f32 1.5, %v943
      %v945 = vmul.f32 %v940, %v944
      %vm946 = vweird.f32 %v773
      %vm947 = vweird.f32 %v940
      %vm948 = vmor %vm946, %vm947
      %v949 = vsel %vm948, %v940, %v945
      %v950 = vrsqrt.pop %v774
      %v951 = vmul.f32 %v950, %v774
      %v952 = vmul.f32 %v951, %v950
      %v953 = vmul.f32 0.5, %v952
      %v954 = vsub.f32 1.5, %v953
      %v955 = vmul.f32 %v950, %v954
      %vm956 = vweird.f32 %v774
      %vm957 = vweird.f32 %v950
      %vm958 = vmor %vm956, %vm957
      %v959 = vsel %vm958, %v950, %v955
      %v960 = vrsqrt.pop %v775
      %v961 = vmul.f32 %v960, %v775
      %v962 = vmul.f32 %v961, %v960
      %v963 = vmul.f32 0.5, %v962
      %v964 = vsub.f32 1.5, %v963
      %v965 = vmul.f32 %v960, %v964
      %vm966 = vweird.f32 %v775
      %vm967 = vweird.f32 %v960
      %vm968 = vmor %vm966, %vm967
      %v969 = vsel %vm968, %v960, %v965
      %v970 = vrsqrt.pop %v776
      %v971 = vmul.f32 %v970, %v776
      %v972 = vmul.f32 %v971, %v970
      %v973 = vmul.f32 0.5, %v972
      %v974 = vsub.f32 1.5, %v973
      %v975 = vmul.f32 %v970, %v974
      %vm976 = vweird.f32 %v776
      %vm977 = vweird.f32 %v970
      %vm978 = vmor %vm976, %vm977
      %v979 = vsel %vm978, %v970, %v975
      %v980 = vrsqrt.pop %v777
      %v981 = vmul.f32 %v980, %v777
      %v982 = vmul.f32 %v981, %v980
      %v983 = vmul.f32 0.5, %v982
      %v984 = vsub.f32 1.5, %v983
      %v985 = vmul.f32 %v980, %v984
      %vm986 = vweird.f32 %v777
      %vm987 = vweird.f32 %v980
      %vm988 = vmor %vm986, %vm987
      %v989 = vsel %vm988, %v980, %v985
      %v990 = vrsqrt.pop %v778
      %v991 = vmul.f32 %v990, %v778
      %v992 = vmul.f32 %v991, %v990
      %v993 = vmul.f32 0.5, %v992
      %v994 = vsub.f32 1.5, %v993
      %v995 = vmul.f32 %v990, %v994
      %vm996 = vweird.f32 %v778
      %vm997 = vweird.f32 %v990
      %vm998 = vmor %vm996, %vm997
      %v999 = vsel %vm998, %v990, %v995
      %v1000 = vrsqrt.pop %v779
      %v1001 = vmul.f32 %v1000, %v779
      %v1002 = vmul.f32 %v1001, %v1000
      %v1003 = vmul.f32 0.5, %v1002
      %v1004 = vsub.f32 1.5, %v1003
      %v1005 = vmul.f32 %v1000, %v1004
      %vm1006 = vweird.f32 %v779
      %vm1007 = vweird.f32 %v1000
      %vm1008 = vmor %vm1006, %vm1007
      %v1009 = vsel %vm1008, %v1000, %v1005
      %v1010 = vrsqrt.pop %v780
      %v1011 = vmul.f32 %v1010, %v780
      %v1012 = vmul.f32 %v1011, %v1010
      %v1013 = vmul.f32 0.5, %v1012
      %v1014 = vsub.f32 1.5, %v1013
      %v1015 = vmul.f32 %v1010, %v1014
      %vm1016 = vweird.f32 %v780
      %vm1017 = vweird.f32 %v1010
      %vm1018 = vmor %vm1016, %vm1017
      %v1019 = vsel %vm1018, %v1010, %v1015
      %v1020 = vrsqrt.pop %v781
      %v1021 = vmul.f32 %v1020, %v781
      %v1022 = vmul.f32 %v1021, %v1020
      %v1023 = vmul.f32 0.5, %v1022
      %v1024 = vsub.f32 1.5, %v1023
      %v1025 = vmul.f32 %v1020, %v1024
      %vm1026 = vweird.f32 %v781
      %vm1027 = vweird.f32 %v1020
      %vm1028 = vmor %vm1026, %vm1027
      %v1029 = vsel %vm1028, %v1020, %v1025
      %v1030 = vrsqrt.pop %v782
      %v1031 = vmul.f32 %v1030, %v782
      %v1032 = vmul.f32 %v1031, %v1030
      %v1033 = vmul.f32 0.5, %v1032
      %v1034 = vsub.f32 1.5, %v1033
      %v1035 = vmul.f32 %v1030, %v1034
      %vm1036 = vweird.f32 %v782
      %vm1037 = vweird.f32 %v1030
      %vm1038 = vmor %vm1036, %vm1037
      %v1039 = vsel %vm1038, %v1030, %v1035
      %v1040 = vrsqrt.pop %v783
      %v1041 = vmul.f32 %v1040, %v783
      %v1042 = vmul.f32 %v1041, %v1040
      %v1043 = vmul.f32 0.5, %v1042
      %v1044 = vsub.f32 1.5, %v1043
      %v1045 = vmul.f32 %v1040, %v1044
      %vm1046 = vweird.f32 %v783
      %vm1047 = vweird.f32 %v1040
      %vm1048 = vmor %vm1046, %vm1047
      %v1049 = vsel %vm1048, %v1040, %v1045
      %v1050 = vrsqrt.pop %v784
      %v1051 = vmul.f32 %v1050, %v784
      %v1052 = vmul.f32 %v1051, %v1050
      %v1053 = vmul.f32 0.5, %v1052
      %v1054 = vsub.f32 1.5, %v1053
      %v1055 = vmul.f32 %v1050, %v1054
      %vm1056 = vweird.f32 %v784
      %vm1057 = vweird.f32 %v1050
      %vm1058 = vmor %vm1056, %vm1057
      %v1059 = vsel %vm1058, %v1050, %v1055
      %v1060 = vrsqrt.pop %v785
      %v1061 = vmul.f32 %v1060, %v785
      %v1062 = vmul.f32 %v1061, %v1060
      %v1063 = vmul.f32 0.5, %v1062
      %v1064 = vsub.f32 1.5, %v1063
      %v1065 = vmul.f32 %v1060, %v1064
      %vm1066 = vweird.f32 %v785
      %vm1067 = vweird.f32 %v1060
      %vm1068 = vmor %vm1066, %vm1067
      %v1069 = vsel %vm1068, %v1060, %v1065
      %v1070 = vrsqrt.pop %v786
      %v1071 = vmul.f32 %v1070, %v786
      %v1072 = vmul.f32 %v1071, %v1070
      %v1073 = vmul.f32 0.5, %v1072
      %v1074 = vsub.f32 1.5, %v1073
      %v1075 = vmul.f32 %v1070, %v1074
      %vm1076 = vweird.f32 %v786
      %vm1077 = vweird.f32 %v1070
      %vm1078 = vmor %vm1076, %vm1077
      %v1079 = vsel %vm1078, %v1070, %v1075
      %v1080 = vrsqrt.pop %v787
      %v1081 = vmul.f32 %v1080, %v787
      %v1082 = vmul.f32 %v1081, %v1080
      %v1083 = vmul.f32 0.5, %v1082
      %v1084 = vsub.f32 1.5, %v1083
      %v1085 = vmul.f32 %v1080, %v1084
      %vm1086 = vweird.f32 %v787
      %vm1087 = vweird.f32 %v1080
      %vm1088 = vmor %vm1086, %vm1087
      %v1089 = vsel %vm1088, %v1080, %v1085
      %v1090 = vrsqrt.pop %v788
      %v1091 = vmul.f32 %v1090, %v788
      %v1092 = vmul.f32 %v1091, %v1090
      %v1093 = vmul.f32 0.5, %v1092
      %v1094 = vsub.f32 1.5, %v1093
      %v1095 = vmul.f32 %v1090, %v1094
      %vm1096 = vweird.f32 %v788
      %vm1097 = vweird.f32 %v1090
      %vm1098 = vmor %vm1096, %vm1097
      %v1099 = vsel %vm1098, %v1090, %v1095
      %v1100 = vrsqrt.pop %v789
      %v1101 = vmul.f32 %v1100, %v789
      %v1102 = vmul.f32 %v1101, %v1100
      %v1103 = vmul.f32 0.5, %v1102
      %v1104 = vsub.f32 1.5, %v1103
      %v1105 = vmul.f32 %v1100, %v1104
      %vm1106 = vweird.f32 %v789
      %vm1107 = vweird.f32 %v1100
      %vm1108 = vmor %vm1106, %vm1107
      %v1109 = vsel %vm1108, %v1100, %v1105
      %v1110 = vmul.f32 %v566, %v799
      %v1111 = vmul.f32 %v567, %v809
      %v1112 = vmul.f32 %v568, %v819
      %v1113 = vmul.f32 %v569, %v829
      %v1114 = vmul.f32 %v570, %v839
      %v1115 = vmul.f32 %v571, %v849
      %v1116 = vmul.f32 %v572, %v859
      %v1117 = vmul.f32 %v573, %v869
      %v1118 = vmul.f32 %v574, %v879
      %v1119 = vmul.f32 %v575, %v889
      %v1120 = vmul.f32 %v576, %v899
      %v1121 = vmul.f32 %v577, %v909
      %v1122 = vmul.f32 %v578, %v919
      %v1123 = vmul.f32 %v579, %v929
      %v1124 = vmul.f32 %v580, %v939
      %v1125 = vmul.f32 %v581, %v949
      %v1126 = vmul.f32 %v582, %v959
      %v1127 = vmul.f32 %v583, %v969
      %v1128 = vmul.f32 %v584, %v979
      %v1129 = vmul.f32 %v585, %v989
      %v1130 = vmul.f32 %v586, %v999
      %v1131 = vmul.f32 %v587, %v1009
      %v1132 = vmul.f32 %v588, %v1019
      %v1133 = vmul.f32 %v589, %v1029
      %v1134 = vmul.f32 %v590, %v1039
      %v1135 = vmul.f32 %v591, %v1049
      %v1136 = vmul.f32 %v592, %v1059
      %v1137 = vmul.f32 %v593, %v1069
      %v1138 = vmul.f32 %v594, %v1079
      %v1139 = vmul.f32 %v595, %v1089
      %v1140 = vmul.f32 %v596, %v1099
      %v1141 = vmul.f32 %v597, %v1109
      %v1142 = vld [vmem:[%s1] sm:$0x1]
      %v1143 = vunpack.c.l.bf16 %v1142
      %v1144 = vperm.slane %v1143, 0
      %v1145 = vmul.f32 %v1110, %v1144
      %v1146 = vmul.f32 %v1111, %v1144
      %v1147 = vmul.f32 %v1112, %v1144
      %v1148 = vmul.f32 %v1113, %v1144
      %v1149 = vmul.f32 %v1114, %v1144
      %v1150 = vmul.f32 %v1115, %v1144
      %v1151 = vmul.f32 %v1116, %v1144
      %v1152 = vmul.f32 %v1117, %v1144
      %v1153 = vmul.f32 %v1118, %v1144
      %v1154 = vmul.f32 %v1119, %v1144
      %v1155 = vmul.f32 %v1120, %v1144
      %v1156 = vmul.f32 %v1121, %v1144
      %v1157 = vmul.f32 %v1122, %v1144
      %v1158 = vmul.f32 %v1123, %v1144
      %v1159 = vmul.f32 %v1124, %v1144
      %v1160 = vmul.f32 %v1125, %v1144
      %v1161 = vmul.f32 %v1126, %v1144
      %v1162 = vmul.f32 %v1127, %v1144
      %v1163 = vmul.f32 %v1128, %v1144
      %v1164 = vmul.f32 %v1129, %v1144
      %v1165 = vmul.f32 %v1130, %v1144
      %v1166 = vmul.f32 %v1131, %v1144
      %v1167 = vmul.f32 %v1132, %v1144
      %v1168 = vmul.f32 %v1133, %v1144
      %v1169 = vmul.f32 %v1134, %v1144
      %v1170 = vmul.f32 %v1135, %v1144
      %v1171 = vmul.f32 %v1136, %v1144
      %v1172 = vmul.f32 %v1137, %v1144
      %v1173 = vmul.f32 %v1138, %v1144
      %v1174 = vmul.f32 %v1139, %v1144
      %v1175 = vmul.f32 %v1140, %v1144
      %v1176 = vmul.f32 %v1141, %v1144
      %v1177 = vld [vmem:[%s2] sm:$0x1]
      %v1178 = vunpack.c.l.bf16 %v1177
      %v1179 = vperm.slane %v1178, 0
      %v1180 = vadd.f32 %v1145, %v1179
      %v1181 = vadd.f32 %v1146, %v1179
      %v1182 = vadd.f32 %v1147, %v1179
      %v1183 = vadd.f32 %v1148, %v1179
      %v1184 = vadd.f32 %v1149, %v1179
      %v1185 = vadd.f32 %v1150, %v1179
      %v1186 = vadd.f32 %v1151, %v1179
      %v1187 = vadd.f32 %v1152, %v1179
      %v1188 = vadd.f32 %v1153, %v1179
      %v1189 = vadd.f32 %v1154, %v1179
      %v1190 = vadd.f32 %v1155, %v1179
      %v1191 = vadd.f32 %v1156, %v1179
      %v1192 = vadd.f32 %v1157, %v1179
      %v1193 = vadd.f32 %v1158, %v1179
      %v1194 = vadd.f32 %v1159, %v1179
      %v1195 = vadd.f32 %v1160, %v1179
      %v1196 = vadd.f32 %v1161, %v1179
      %v1197 = vadd.f32 %v1162, %v1179
      %v1198 = vadd.f32 %v1163, %v1179
      %v1199 = vadd.f32 %v1164, %v1179
      %v1200 = vadd.f32 %v1165, %v1179
      %v1201 = vadd.f32 %v1166, %v1179
      %v1202 = vadd.f32 %v1167, %v1179
      %v1203 = vadd.f32 %v1168, %v1179
      %v1204 = vadd.f32 %v1169, %v1179
      %v1205 = vadd.f32 %v1170, %v1179
      %v1206 = vadd.f32 %v1171, %v1179
      %v1207 = vadd.f32 %v1172, %v1179
      %v1208 = vadd.f32 %v1173, %v1179
      %v1209 = vadd.f32 %v1174, %v1179
      %v1210 = vadd.f32 %v1175, %v1179
      %v1211 = vadd.f32 %v1176, %v1179
      %v1212 = vpack.c.bf16 %v1181, %v1180
      %v1213 = vpack.c.bf16 %v1183, %v1182
      %v1214 = vpack.c.bf16 %v1185, %v1184
      %v1215 = vpack.c.bf16 %v1187, %v1186
      %v1216 = vpack.c.bf16 %v1189, %v1188
      %v1217 = vpack.c.bf16 %v1191, %v1190
      %v1218 = vpack.c.bf16 %v1193, %v1192
      %v1219 = vpack.c.bf16 %v1195, %v1194
      %v1220 = vpack.c.bf16 %v1197, %v1196
      %v1221 = vpack.c.bf16 %v1199, %v1198
      %v1222 = vpack.c.bf16 %v1201, %v1200
      %v1223 = vpack.c.bf16 %v1203, %v1202
      %v1224 = vpack.c.bf16 %v1205, %v1204
      %v1225 = vpack.c.bf16 %v1207, %v1206
      %v1226 = vpack.c.bf16 %v1209, %v1208
      %v1227 = vpack.c.bf16 %v1211, %v1210
      %v1228 = vld [vmem:[%s3] sm:$0xff]
      %v1229 = vld [vmem:[%s3 + $0x8] sm:$0xff]
      %v1230 = vld [vmem:[%s3 + $0x10] sm:$0xff]
      %v1231 = vld [vmem:[%s3 + $0x18] sm:$0xff]
      %v1232 = vld [vmem:[%s3 + $0x20] sm:$0xff]
      %v1233 = vld [vmem:[%s3 + $0x28] sm:$0xff]
      %v1234 = vld [vmem:[%s3 + $0x30] sm:$0xff]
      %v1235 = vld [vmem:[%s3 + $0x38] sm:$0xff]
      %v1236 = vld [vmem:[%s4] sm:$0x3]
      %v1237 = vunpack.c.l.bf16 %v1236
      %v1239 = vperm.slane %v1237, 0
      %v1240 = vperm.slane %v1237, 2
      %v1243 = vperm.slane %v1239, 0
      %v1244 = vperm.slane %v1240, 0
      %v1253 = vunpack.c.l.b16 %v1228
      %v1254 = vunpack.c.h.b16 %v1228
      %v1255 = vunpack.c.l.b16 %v1229
      %v1256 = vunpack.c.h.b16 %v1229
      %v1257 = vunpack.c.l.b16 %v1230
      %v1258 = vunpack.c.h.b16 %v1230
      %v1259 = vunpack.c.l.b16 %v1231
      %v1260 = vunpack.c.h.b16 %v1231
      %v1261 = vunpack.c.l.b16 %v1232
      %v1262 = vunpack.c.h.b16 %v1232
      %v1263 = vunpack.c.l.b16 %v1233
      %v1264 = vunpack.c.h.b16 %v1233
      %v1265 = vunpack.c.l.b16 %v1234
      %v1266 = vunpack.c.h.b16 %v1234
      %v1267 = vunpack.c.l.b16 %v1235
      %v1268 = vunpack.c.h.b16 %v1235
      %v1269 = vpack.c.b16 %v1255, %v1253
      %v1270 = vpack.c.b16 %v1256, %v1254
      %v1271 = vpack.c.b16 %v1259, %v1257
      %v1272 = vpack.c.b16 %v1260, %v1258
      %v1273 = vpack.c.b16 %v1263, %v1261
      %v1274 = vpack.c.b16 %v1264, %v1262
      %v1275 = vpack.c.b16 %v1267, %v1265
      %v1276 = vpack.c.b16 %v1268, %v1266
      %v1286 = vsel %vm430, %v1212, 0
      %v1289 = vsel %vm430, %v1213, 0
      %v1292 = vsel %vm430, %v1214, 0
      %v1295 = vsel %vm430, %v1215, 0
      %v1298 = vsel %vm430, %v1216, 0
      %v1301 = vsel %vm430, %v1217, 0
      %v1304 = vsel %vm430, %v1218, 0
      %v1307 = vsel %vm430, %v1219, 0
      %v1310 = vsel %vm430, %v1220, 0
      %v1313 = vsel %vm430, %v1221, 0
      %v1316 = vsel %vm430, %v1222, 0
      %v1319 = vsel %vm430, %v1223, 0
      %v1322 = vsel %vm430, %v1224, 0
      %v1325 = vsel %vm430, %v1225, 0
      %v1328 = vsel %vm430, %v1226, 0
      %v1331 = vsel %vm430, %v1227, 0
      %1333 = vmatpush.bf16.msra.mxu0 0
      %1334 = vmatpush.bf16.msra.mxu0 0
      %1335 = vmatpush.bf16.msra.mxu0 0
      %1336 = vmatpush.bf16.msra.mxu0 0
      %1337 = vmatpush.bf16.msra.mxu0 %v1275
      %1338 = vmatpush.bf16.msra.mxu0 %v1273
      %1339 = vmatpush.bf16.msra.mxu0 %v1271
      %1340 = vmatpush.bf16.msra.mxu0 %v1269
      %1341 = vmatmul.bf16.gmra.mxu0 %v1286
      %v1342 = vpop.f32.mrf.mxu0
      %v1343 = vadd.f32 %v1243, %v1342
      %v1344 = vpop.f32.mrf.mxu0
      %v1345 = vadd.f32 %v1243, %v1344
      %1346 = vmatmul.bf16.gmra.mxu0 %v1289
      %v1347 = vpop.f32.mrf.mxu0
      %v1348 = vadd.f32 %v1243, %v1347
      %v1349 = vpop.f32.mrf.mxu0
      %v1350 = vadd.f32 %v1243, %v1349
      %1351 = vmatmul.bf16.gmra.mxu0 %v1292
      %v1352 = vpop.f32.mrf.mxu0
      %v1353 = vadd.f32 %v1243, %v1352
      %v1354 = vpop.f32.mrf.mxu0
      %v1355 = vadd.f32 %v1243, %v1354
      %1356 = vmatmul.bf16.gmra.mxu0 %v1295
      %v1357 = vpop.f32.mrf.mxu0
      %v1358 = vadd.f32 %v1243, %v1357
      %v1359 = vpop.f32.mrf.mxu0
      %v1360 = vadd.f32 %v1243, %v1359
      %1361 = vmatmul.bf16.gmra.mxu0 %v1298
      %v1362 = vpop.f32.mrf.mxu0
      %v1363 = vadd.f32 %v1243, %v1362
      %v1364 = vpop.f32.mrf.mxu0
      %v1365 = vadd.f32 %v1243, %v1364
      %1366 = vmatmul.bf16.gmra.mxu0 %v1301
      %v1367 = vpop.f32.mrf.mxu0
      %v1368 = vadd.f32 %v1243, %v1367
      %v1369 = vpop.f32.mrf.mxu0
      %v1370 = vadd.f32 %v1243, %v1369
      %1371 = vmatmul.bf16.gmra.mxu0 %v1304
      %v1372 = vpop.f32.mrf.mxu0
      %v1373 = vadd.f32 %v1243, %v1372
      %v1374 = vpop.f32.mrf.mxu0
      %v1375 = vadd.f32 %v1243, %v1374
      %1376 = vmatmul.bf16.gmra.mxu0 %v1307
      %v1377 = vpop.f32.mrf.mxu0
      %v1378 = vadd.f32 %v1243, %v1377
      %v1379 = vpop.f32.mrf.mxu0
      %v1380 = vadd.f32 %v1243, %v1379
      %1381 = vmatmul.bf16.gmra.mxu0 %v1310
      %v1382 = vpop.f32.mrf.mxu0
      %v1383 = vadd.f32 %v1243, %v1382
      %v1384 = vpop.f32.mrf.mxu0
      %v1385 = vadd.f32 %v1243, %v1384
      %1386 = vmatmul.bf16.gmra.mxu0 %v1313
      %v1387 = vpop.f32.mrf.mxu0
      %v1388 = vadd.f32 %v1243, %v1387
      %v1389 = vpop.f32.mrf.mxu0
      %v1390 = vadd.f32 %v1243, %v1389
      %1391 = vmatmul.bf16.gmra.mxu0 %v1316
      %v1392 = vpop.f32.mrf.mxu0
      %v1393 = vadd.f32 %v1243, %v1392
      %v1394 = vpop.f32.mrf.mxu0
      %v1395 = vadd.f32 %v1243, %v1394
      %1396 = vmatmul.bf16.gmra.mxu0 %v1319
      %v1397 = vpop.f32.mrf.mxu0
      %v1398 = vadd.f32 %v1243, %v1397
      %v1399 = vpop.f32.mrf.mxu0
      %v1400 = vadd.f32 %v1243, %v1399
      %1401 = vmatmul.bf16.gmra.mxu0 %v1322
      %v1402 = vpop.f32.mrf.mxu0
      %v1403 = vadd.f32 %v1243, %v1402
      %v1404 = vpop.f32.mrf.mxu0
      %v1405 = vadd.f32 %v1243, %v1404
      %1406 = vmatmul.bf16.gmra.mxu0 %v1325
      %v1407 = vpop.f32.mrf.mxu0
      %v1408 = vadd.f32 %v1243, %v1407
      %v1409 = vpop.f32.mrf.mxu0
      %v1410 = vadd.f32 %v1243, %v1409
      %1411 = vmatmul.bf16.gmra.mxu0 %v1328
      %v1412 = vpop.f32.mrf.mxu0
      %v1413 = vadd.f32 %v1243, %v1412
      %v1414 = vpop.f32.mrf.mxu0
      %v1415 = vadd.f32 %v1243, %v1414
      %1416 = vmatmul.bf16.gmra.mxu0 %v1331
      %v1417 = vpop.f32.mrf.mxu0
      %v1418 = vadd.f32 %v1243, %v1417
      %v1419 = vpop.f32.mrf.mxu0
      %v1420 = vadd.f32 %v1243, %v1419
      %1421 = vdwg.mxu0
      %1422 = vmatpush.bf16.msra.mxu0 0
      %1423 = vmatpush.bf16.msra.mxu0 0
      %1424 = vmatpush.bf16.msra.mxu0 0
      %1425 = vmatpush.bf16.msra.mxu0 0
      %1426 = vmatpush.bf16.msra.mxu0 %v1276
      %1427 = vmatpush.bf16.msra.mxu0 %v1274
      %1428 = vmatpush.bf16.msra.mxu0 %v1272
      %1429 = vmatpush.bf16.msra.mxu0 %v1270
      %1430 = vmatmul.bf16.gmra.mxu0 %v1286
      %v1431 = vpop.f32.mrf.mxu0
      %v1432 = vadd.f32 %v1244, %v1431
      %v1433 = vpop.f32.mrf.mxu0
      %v1434 = vadd.f32 %v1244, %v1433
      %1435 = vmatmul.bf16.gmra.mxu0 %v1289
      %v1436 = vpop.f32.mrf.mxu0
      %v1437 = vadd.f32 %v1244, %v1436
      %v1438 = vpop.f32.mrf.mxu0
      %v1439 = vadd.f32 %v1244, %v1438
      %1440 = vmatmul.bf16.gmra.mxu0 %v1292
      %v1441 = vpop.f32.mrf.mxu0
      %v1442 = vadd.f32 %v1244, %v1441
      %v1443 = vpop.f32.mrf.mxu0
      %v1444 = vadd.f32 %v1244, %v1443
      %1445 = vmatmul.bf16.gmra.mxu0 %v1295
      %v1446 = vpop.f32.mrf.mxu0
      %v1447 = vadd.f32 %v1244, %v1446
      %v1448 = vpop.f32.mrf.mxu0
      %v1449 = vadd.f32 %v1244, %v1448
      %1450 = vmatmul.bf16.gmra.mxu0 %v1298
      %v1451 = vpop.f32.mrf.mxu0
      %v1452 = vadd.f32 %v1244, %v1451
      %v1453 = vpop.f32.mrf.mxu0
      %v1454 = vadd.f32 %v1244, %v1453
      %1455 = vmatmul.bf16.gmra.mxu0 %v1301
      %v1456 = vpop.f32.mrf.mxu0
      %v1457 = vadd.f32 %v1244, %v1456
      %v1458 = vpop.f32.mrf.mxu0
      %v1459 = vadd.f32 %v1244, %v1458
      %1460 = vmatmul.bf16.gmra.mxu0 %v1304
      %v1461 = vpop.f32.mrf.mxu0
      %v1462 = vadd.f32 %v1244, %v1461
      %v1463 = vpop.f32.mrf.mxu0
      %v1464 = vadd.f32 %v1244, %v1463
      %1465 = vmatmul.bf16.gmra.mxu0 %v1307
      %v1466 = vpop.f32.mrf.mxu0
      %v1467 = vadd.f32 %v1244, %v1466
      %v1468 = vpop.f32.mrf.mxu0
      %v1469 = vadd.f32 %v1244, %v1468
      %1470 = vmatmul.bf16.gmra.mxu0 %v1310
      %v1471 = vpop.f32.mrf.mxu0
      %v1472 = vadd.f32 %v1244, %v1471
      %v1473 = vpop.f32.mrf.mxu0
      %v1474 = vadd.f32 %v1244, %v1473
      %1475 = vmatmul.bf16.gmra.mxu0 %v1313
      %v1476 = vpop.f32.mrf.mxu0
      %v1477 = vadd.f32 %v1244, %v1476
      %v1478 = vpop.f32.mrf.mxu0
      %v1479 = vadd.f32 %v1244, %v1478
      %1480 = vmatmul.bf16.gmra.mxu0 %v1316
      %v1481 = vpop.f32.mrf.mxu0
      %v1482 = vadd.f32 %v1244, %v1481
      %v1483 = vpop.f32.mrf.mxu0
      %v1484 = vadd.f32 %v1244, %v1483
      %1485 = vmatmul.bf16.gmra.mxu0 %v1319
      %v1486 = vpop.f32.mrf.mxu0
      %v1487 = vadd.f32 %v1244, %v1486
      %v1488 = vpop.f32.mrf.mxu0
      %v1489 = vadd.f32 %v1244, %v1488
      %1490 = vmatmul.bf16.gmra.mxu0 %v1322
      %v1491 = vpop.f32.mrf.mxu0
      %v1492 = vadd.f32 %v1244, %v1491
      %v1493 = vpop.f32.mrf.mxu0
      %v1494 = vadd.f32 %v1244, %v1493
      %1495 = vmatmul.bf16.gmra.mxu0 %v1325
      %v1496 = vpop.f32.mrf.mxu0
      %v1497 = vadd.f32 %v1244, %v1496
      %v1498 = vpop.f32.mrf.mxu0
      %v1499 = vadd.f32 %v1244, %v1498
      %1500 = vmatmul.bf16.gmra.mxu0 %v1328
      %v1501 = vpop.f32.mrf.mxu0
      %v1502 = vadd.f32 %v1244, %v1501
      %v1503 = vpop.f32.mrf.mxu0
      %v1504 = vadd.f32 %v1244, %v1503
      %1505 = vmatmul.bf16.gmra.mxu0 %v1331
      %v1506 = vpop.f32.mrf.mxu0
      %v1507 = vadd.f32 %v1244, %v1506
      %v1508 = vpop.f32.mrf.mxu0
      %v1509 = vadd.f32 %v1244, %v1508
      %1510 = vdwg.mxu0
      %v1511 = vmul.f32 %v1343, 0.25
      %v1512 = vmul.f32 %v1345, 0.25
      %v1513 = vmul.f32 %v1348, 0.25
      %v1514 = vmul.f32 %v1350, 0.25
      %v1515 = vmul.f32 %v1353, 0.25
      %v1516 = vmul.f32 %v1355, 0.25
      %v1517 = vmul.f32 %v1358, 0.25
      %v1518 = vmul.f32 %v1360, 0.25
      %v1519 = vmul.f32 %v1363, 0.25
      %v1520 = vmul.f32 %v1365, 0.25
      %v1521 = vmul.f32 %v1368, 0.25
      %v1522 = vmul.f32 %v1370, 0.25
      %v1523 = vmul.f32 %v1373, 0.25
      %v1524 = vmul.f32 %v1375, 0.25
      %v1525 = vmul.f32 %v1378, 0.25
      %v1526 = vmul.f32 %v1380, 0.25
      %v1527 = vmul.f32 %v1383, 0.25
      %v1528 = vmul.f32 %v1385, 0.25
      %v1529 = vmul.f32 %v1388, 0.25
      %v1530 = vmul.f32 %v1390, 0.25
      %v1531 = vmul.f32 %v1393, 0.25
      %v1532 = vmul.f32 %v1395, 0.25
      %v1533 = vmul.f32 %v1398, 0.25
      %v1534 = vmul.f32 %v1400, 0.25
      %v1535 = vmul.f32 %v1403, 0.25
      %v1536 = vmul.f32 %v1405, 0.25
      %v1537 = vmul.f32 %v1408, 0.25
      %v1538 = vmul.f32 %v1410, 0.25
      %v1539 = vmul.f32 %v1413, 0.25
      %v1540 = vmul.f32 %v1415, 0.25
      %v1541 = vmul.f32 %v1418, 0.25
      %v1542 = vmul.f32 %v1420, 0.25
      %v1543 = vpack.c.bf16 %v1511, %v1511
      %v1544 = vpack.c.bf16 %v1512, %v1512
      %v1545 = vpack.c.bf16 %v1513, %v1513
      %v1546 = vpack.c.bf16 %v1514, %v1514
      %v1547 = vpack.c.bf16 %v1515, %v1515
      %v1548 = vpack.c.bf16 %v1516, %v1516
      %v1549 = vpack.c.bf16 %v1517, %v1517
      %v1550 = vpack.c.bf16 %v1518, %v1518
      %v1551 = vpack.c.bf16 %v1519, %v1519
      %v1552 = vpack.c.bf16 %v1520, %v1520
      %v1553 = vpack.c.bf16 %v1521, %v1521
      %v1554 = vpack.c.bf16 %v1522, %v1522
      %v1555 = vpack.c.bf16 %v1523, %v1523
      %v1556 = vpack.c.bf16 %v1524, %v1524
      %v1557 = vpack.c.bf16 %v1525, %v1525
      %v1558 = vpack.c.bf16 %v1526, %v1526
      %v1559 = vpack.c.bf16 %v1527, %v1527
      %v1560 = vpack.c.bf16 %v1528, %v1528
      %v1561 = vpack.c.bf16 %v1529, %v1529
      %v1562 = vpack.c.bf16 %v1530, %v1530
      %v1563 = vpack.c.bf16 %v1531, %v1531
      %v1564 = vpack.c.bf16 %v1532, %v1532
      %v1565 = vpack.c.bf16 %v1533, %v1533
      %v1566 = vpack.c.bf16 %v1534, %v1534
      %v1567 = vpack.c.bf16 %v1535, %v1535
      %v1568 = vpack.c.bf16 %v1536, %v1536
      %v1569 = vpack.c.bf16 %v1537, %v1537
      %v1570 = vpack.c.bf16 %v1538, %v1538
      %v1571 = vpack.c.bf16 %v1539, %v1539
      %v1572 = vpack.c.bf16 %v1540, %v1540
      %v1573 = vpack.c.bf16 %v1541, %v1541
      %v1574 = vpack.c.bf16 %v1542, %v1542
      %vm1575 = vcmask 519168
      %1576 = vst.msk [vmem:[%s343] sm:$0xf] %vm1575, %v1543
      %1577 = vst.msk [vmem:[%s343 + $0x4] sm:$0xf] %vm1575, %v1544
      %1578 = vst.msk [vmem:[%s343 + $0x8] sm:$0xf] %vm1575, %v1545
      %1579 = vst.msk [vmem:[%s343 + $0xc] sm:$0xf] %vm1575, %v1546
      %1580 = vst.msk [vmem:[%s343 + $0x10] sm:$0xf] %vm1575, %v1547
      %1581 = vst.msk [vmem:[%s343 + $0x14] sm:$0xf] %vm1575, %v1548
      %1582 = vst.msk [vmem:[%s343 + $0x18] sm:$0xf] %vm1575, %v1549
      %1583 = vst.msk [vmem:[%s343 + $0x1c] sm:$0xf] %vm1575, %v1550
      %1584 = vst.msk [vmem:[%s343 + $0x20] sm:$0xf] %vm1575, %v1551
      %1585 = vst.msk [vmem:[%s343 + $0x24] sm:$0xf] %vm1575, %v1552
      %1586 = vst.msk [vmem:[%s343 + $0x28] sm:$0xf] %vm1575, %v1553
      %1587 = vst.msk [vmem:[%s343 + $0x2c] sm:$0xf] %vm1575, %v1554
      %1588 = vst.msk [vmem:[%s343 + $0x30] sm:$0xf] %vm1575, %v1555
      %1589 = vst.msk [vmem:[%s343 + $0x34] sm:$0xf] %vm1575, %v1556
      %1590 = vst.msk [vmem:[%s343 + $0x38] sm:$0xf] %vm1575, %v1557
      %1591 = vst.msk [vmem:[%s343 + $0x3c] sm:$0xf] %vm1575, %v1558
      %1592 = vst.msk [vmem:[%s343 + $0x40] sm:$0xf] %vm1575, %v1559
      %1593 = vst.msk [vmem:[%s343 + $0x44] sm:$0xf] %vm1575, %v1560
      %1594 = vst.msk [vmem:[%s343 + $0x48] sm:$0xf] %vm1575, %v1561
      %1595 = vst.msk [vmem:[%s343 + $0x4c] sm:$0xf] %vm1575, %v1562
      %1596 = vst.msk [vmem:[%s343 + $0x50] sm:$0xf] %vm1575, %v1563
      %1597 = vst.msk [vmem:[%s343 + $0x54] sm:$0xf] %vm1575, %v1564
      %1598 = vst.msk [vmem:[%s343 + $0x58] sm:$0xf] %vm1575, %v1565
      %1599 = vst.msk [vmem:[%s343 + $0x5c] sm:$0xf] %vm1575, %v1566
      %1600 = vst.msk [vmem:[%s343 + $0x60] sm:$0xf] %vm1575, %v1567
      %1601 = vst.msk [vmem:[%s343 + $0x64] sm:$0xf] %vm1575, %v1568
      %1602 = vst.msk [vmem:[%s343 + $0x68] sm:$0xf] %vm1575, %v1569
      %1603 = vst.msk [vmem:[%s343 + $0x6c] sm:$0xf] %vm1575, %v1570
      %1604 = vst.msk [vmem:[%s343 + $0x70] sm:$0xf] %vm1575, %v1571
      %1605 = vst.msk [vmem:[%s343 + $0x74] sm:$0xf] %vm1575, %v1572
      %1606 = vst.msk [vmem:[%s343 + $0x78] sm:$0xf] %vm1575, %v1573
      %1607 = vst.msk [vmem:[%s343 + $0x7c] sm:$0xf] %vm1575, %v1574
      %v1608 = vpack.c.bf16 %v1343, %v1343
      %v1609 = vpack.c.bf16 %v1345, %v1345
      %v1610 = vpack.c.bf16 %v1348, %v1348
      %v1611 = vpack.c.bf16 %v1350, %v1350
      %v1612 = vpack.c.bf16 %v1353, %v1353
      %v1613 = vpack.c.bf16 %v1355, %v1355
      %v1614 = vpack.c.bf16 %v1358, %v1358
      %v1615 = vpack.c.bf16 %v1360, %v1360
      %v1616 = vpack.c.bf16 %v1363, %v1363
      %v1617 = vpack.c.bf16 %v1365, %v1365
      %v1618 = vpack.c.bf16 %v1368, %v1368
      %v1619 = vpack.c.bf16 %v1370, %v1370
      %v1620 = vpack.c.bf16 %v1373, %v1373
      %v1621 = vpack.c.bf16 %v1375, %v1375
      %v1622 = vpack.c.bf16 %v1378, %v1378
      %v1623 = vpack.c.bf16 %v1380, %v1380
      %v1624 = vpack.c.bf16 %v1383, %v1383
      %v1625 = vpack.c.bf16 %v1385, %v1385
      %v1626 = vpack.c.bf16 %v1388, %v1388
      %v1627 = vpack.c.bf16 %v1390, %v1390
      %v1628 = vpack.c.bf16 %v1393, %v1393
      %v1629 = vpack.c.bf16 %v1395, %v1395
      %v1630 = vpack.c.bf16 %v1398, %v1398
      %v1631 = vpack.c.bf16 %v1400, %v1400
      %v1632 = vpack.c.bf16 %v1403, %v1403
      %v1633 = vpack.c.bf16 %v1405, %v1405
      %v1634 = vpack.c.bf16 %v1408, %v1408
      %v1635 = vpack.c.bf16 %v1410, %v1410
      %v1636 = vpack.c.bf16 %v1413, %v1413
      %v1637 = vpack.c.bf16 %v1415, %v1415
      %v1638 = vpack.c.bf16 %v1418, %v1418
      %v1639 = vpack.c.bf16 %v1420, %v1420
      %1672 = vrot.lane.b32.xlu0 %v1608, 64
      %v1673 = vpop.permute.xlu0 %1672
      %1674 = vrot.lane.b32.xlu0 %v1609, 64
      %v1675 = vpop.permute.xlu0 %1674
      %1676 = vrot.lane.b32.xlu0 %v1610, 64
      %v1677 = vpop.permute.xlu0 %1676
      %1678 = vrot.lane.b32.xlu0 %v1611, 64
      %v1679 = vpop.permute.xlu0 %1678
      %1680 = vrot.lane.b32.xlu0 %v1612, 64
      %v1681 = vpop.permute.xlu0 %1680
      %1682 = vrot.lane.b32.xlu0 %v1613, 64
      %v1683 = vpop.permute.xlu0 %1682
      %1684 = vrot.lane.b32.xlu0 %v1614, 64
      %v1685 = vpop.permute.xlu0 %1684
      %1686 = vrot.lane.b32.xlu0 %v1615, 64
      %v1687 = vpop.permute.xlu0 %1686
      %1688 = vrot.lane.b32.xlu0 %v1616, 64
      %v1689 = vpop.permute.xlu0 %1688
      %1690 = vrot.lane.b32.xlu0 %v1617, 64
      %v1691 = vpop.permute.xlu0 %1690
      %1692 = vrot.lane.b32.xlu0 %v1618, 64
      %v1693 = vpop.permute.xlu0 %1692
      %1694 = vrot.lane.b32.xlu0 %v1619, 64
      %v1695 = vpop.permute.xlu0 %1694
      %1696 = vrot.lane.b32.xlu0 %v1620, 64
      %v1697 = vpop.permute.xlu0 %1696
      %1698 = vrot.lane.b32.xlu0 %v1621, 64
      %v1699 = vpop.permute.xlu0 %1698
      %1700 = vrot.lane.b32.xlu0 %v1622, 64
      %v1701 = vpop.permute.xlu0 %1700
      %1702 = vrot.lane.b32.xlu0 %v1623, 64
      %v1703 = vpop.permute.xlu0 %1702
      %1704 = vrot.lane.b32.xlu0 %v1624, 64
      %v1705 = vpop.permute.xlu0 %1704
      %1706 = vrot.lane.b32.xlu0 %v1625, 64
      %v1707 = vpop.permute.xlu0 %1706
      %1708 = vrot.lane.b32.xlu0 %v1626, 64
      %v1709 = vpop.permute.xlu0 %1708
      %1710 = vrot.lane.b32.xlu0 %v1627, 64
      %v1711 = vpop.permute.xlu0 %1710
      %1712 = vrot.lane.b32.xlu0 %v1628, 64
      %v1713 = vpop.permute.xlu0 %1712
      %1714 = vrot.lane.b32.xlu0 %v1629, 64
      %v1715 = vpop.permute.xlu0 %1714
      %1716 = vrot.lane.b32.xlu0 %v1630, 64
      %v1717 = vpop.permute.xlu0 %1716
      %1718 = vrot.lane.b32.xlu0 %v1631, 64
      %v1719 = vpop.permute.xlu0 %1718
      %1720 = vrot.lane.b32.xlu0 %v1632, 64
      %v1721 = vpop.permute.xlu0 %1720
      %1722 = vrot.lane.b32.xlu0 %v1633, 64
      %v1723 = vpop.permute.xlu0 %1722
      %1724 = vrot.lane.b32.xlu0 %v1634, 64
      %v1725 = vpop.permute.xlu0 %1724
      %1726 = vrot.lane.b32.xlu0 %v1635, 64
      %v1727 = vpop.permute.xlu0 %1726
      %1728 = vrot.lane.b32.xlu0 %v1636, 64
      %v1729 = vpop.permute.xlu0 %1728
      %1730 = vrot.lane.b32.xlu0 %v1637, 64
      %v1731 = vpop.permute.xlu0 %1730
      %1732 = vrot.lane.b32.xlu0 %v1638, 64
      %v1733 = vpop.permute.xlu0 %1732
      %1734 = vrot.lane.b32.xlu0 %v1639, 64
      %v1735 = vpop.permute.xlu0 %1734
      %1768 = vst.msk [vmem:[%s353] sm:$0xf] %vm1575, %v1673
      %1769 = vst.msk [vmem:[%s353 + $0x4] sm:$0xf] %vm1575, %v1675
      %1770 = vst.msk [vmem:[%s353 + $0x8] sm:$0xf] %vm1575, %v1677
      %1771 = vst.msk [vmem:[%s353 + $0xc] sm:$0xf] %vm1575, %v1679
      %1772 = vst.msk [vmem:[%s353 + $0x10] sm:$0xf] %vm1575, %v1681
      %1773 = vst.msk [vmem:[%s353 + $0x14] sm:$0xf] %vm1575, %v1683
      %1774 = vst.msk [vmem:[%s353 + $0x18] sm:$0xf] %vm1575, %v1685
      %1775 = vst.msk [vmem:[%s353 + $0x1c] sm:$0xf] %vm1575, %v1687
      %1776 = vst.msk [vmem:[%s353 + $0x20] sm:$0xf] %vm1575, %v1689
      %1777 = vst.msk [vmem:[%s353 + $0x24] sm:$0xf] %vm1575, %v1691
      %1778 = vst.msk [vmem:[%s353 + $0x28] sm:$0xf] %vm1575, %v1693
      %1779 = vst.msk [vmem:[%s353 + $0x2c] sm:$0xf] %vm1575, %v1695
      %1780 = vst.msk [vmem:[%s353 + $0x30] sm:$0xf] %vm1575, %v1697
      %1781 = vst.msk [vmem:[%s353 + $0x34] sm:$0xf] %vm1575, %v1699
      %1782 = vst.msk [vmem:[%s353 + $0x38] sm:$0xf] %vm1575, %v1701
      %1783 = vst.msk [vmem:[%s353 + $0x3c] sm:$0xf] %vm1575, %v1703
      %1784 = vst.msk [vmem:[%s353 + $0x40] sm:$0xf] %vm1575, %v1705
      %1785 = vst.msk [vmem:[%s353 + $0x44] sm:$0xf] %vm1575, %v1707
      %1786 = vst.msk [vmem:[%s353 + $0x48] sm:$0xf] %vm1575, %v1709
      %1787 = vst.msk [vmem:[%s353 + $0x4c] sm:$0xf] %vm1575, %v1711
      %1788 = vst.msk [vmem:[%s353 + $0x50] sm:$0xf] %vm1575, %v1713
      %1789 = vst.msk [vmem:[%s353 + $0x54] sm:$0xf] %vm1575, %v1715
      %1790 = vst.msk [vmem:[%s353 + $0x58] sm:$0xf] %vm1575, %v1717
      %1791 = vst.msk [vmem:[%s353 + $0x5c] sm:$0xf] %vm1575, %v1719
      %1792 = vst.msk [vmem:[%s353 + $0x60] sm:$0xf] %vm1575, %v1721
      %1793 = vst.msk [vmem:[%s353 + $0x64] sm:$0xf] %vm1575, %v1723
      %1794 = vst.msk [vmem:[%s353 + $0x68] sm:$0xf] %vm1575, %v1725
      %1795 = vst.msk [vmem:[%s353 + $0x6c] sm:$0xf] %vm1575, %v1727
      %1796 = vst.msk [vmem:[%s353 + $0x70] sm:$0xf] %vm1575, %v1729
      %1797 = vst.msk [vmem:[%s353 + $0x74] sm:$0xf] %vm1575, %v1731
      %1798 = vst.msk [vmem:[%s353 + $0x78] sm:$0xf] %vm1575, %v1733
      %1799 = vst.msk [vmem:[%s353 + $0x7c] sm:$0xf] %vm1575, %v1735
      %v1800 = vpack.c.bf16 %v1432, %v1432
      %v1801 = vpack.c.bf16 %v1434, %v1434
      %v1802 = vpack.c.bf16 %v1437, %v1437
      %v1803 = vpack.c.bf16 %v1439, %v1439
      %v1804 = vpack.c.bf16 %v1442, %v1442
      %v1805 = vpack.c.bf16 %v1444, %v1444
      %v1806 = vpack.c.bf16 %v1447, %v1447
      %v1807 = vpack.c.bf16 %v1449, %v1449
      %v1808 = vpack.c.bf16 %v1452, %v1452
      %v1809 = vpack.c.bf16 %v1454, %v1454
      %v1810 = vpack.c.bf16 %v1457, %v1457
      %v1811 = vpack.c.bf16 %v1459, %v1459
      %v1812 = vpack.c.bf16 %v1462, %v1462
      %v1813 = vpack.c.bf16 %v1464, %v1464
      %v1814 = vpack.c.bf16 %v1467, %v1467
      %v1815 = vpack.c.bf16 %v1469, %v1469
      %v1816 = vpack.c.bf16 %v1472, %v1472
      %v1817 = vpack.c.bf16 %v1474, %v1474
      %v1818 = vpack.c.bf16 %v1477, %v1477
      %v1819 = vpack.c.bf16 %v1479, %v1479
      %v1820 = vpack.c.bf16 %v1482, %v1482
      %v1821 = vpack.c.bf16 %v1484, %v1484
      %v1822 = vpack.c.bf16 %v1487, %v1487
      %v1823 = vpack.c.bf16 %v1489, %v1489
      %v1824 = vpack.c.bf16 %v1492, %v1492
      %v1825 = vpack.c.bf16 %v1494, %v1494
      %v1826 = vpack.c.bf16 %v1497, %v1497
      %v1827 = vpack.c.bf16 %v1499, %v1499
      %v1828 = vpack.c.bf16 %v1502, %v1502
      %v1829 = vpack.c.bf16 %v1504, %v1504
      %v1830 = vpack.c.bf16 %v1507, %v1507
      %v1831 = vpack.c.bf16 %v1509, %v1509
      %1832 = vst.msk [vmem:[%s363] sm:$0xf] %vm1575, %v1800
      %1833 = vst.msk [vmem:[%s363 + $0x4] sm:$0xf] %vm1575, %v1801
      %1834 = vst.msk [vmem:[%s363 + $0x8] sm:$0xf] %vm1575, %v1802
      %1835 = vst.msk [vmem:[%s363 + $0xc] sm:$0xf] %vm1575, %v1803
      %1836 = vst.msk [vmem:[%s363 + $0x10] sm:$0xf] %vm1575, %v1804
      %1837 = vst.msk [vmem:[%s363 + $0x14] sm:$0xf] %vm1575, %v1805
      %1838 = vst.msk [vmem:[%s363 + $0x18] sm:$0xf] %vm1575, %v1806
      %1839 = vst.msk [vmem:[%s363 + $0x1c] sm:$0xf] %vm1575, %v1807
      %1840 = vst.msk [vmem:[%s363 + $0x20] sm:$0xf] %vm1575, %v1808
      %1841 = vst.msk [vmem:[%s363 + $0x24] sm:$0xf] %vm1575, %v1809
      %1842 = vst.msk [vmem:[%s363 + $0x28] sm:$0xf] %vm1575, %v1810
      %1843 = vst.msk [vmem:[%s363 + $0x2c] sm:$0xf] %vm1575, %v1811
      %1844 = vst.msk [vmem:[%s363 + $0x30] sm:$0xf] %vm1575, %v1812
      %1845 = vst.msk [vmem:[%s363 + $0x34] sm:$0xf] %vm1575, %v1813
      %1846 = vst.msk [vmem:[%s363 + $0x38] sm:$0xf] %vm1575, %v1814
      %1847 = vst.msk [vmem:[%s363 + $0x3c] sm:$0xf] %vm1575, %v1815
      %1848 = vst.msk [vmem:[%s363 + $0x40] sm:$0xf] %vm1575, %v1816
      %1849 = vst.msk [vmem:[%s363 + $0x44] sm:$0xf] %vm1575, %v1817
      %1850 = vst.msk [vmem:[%s363 + $0x48] sm:$0xf] %vm1575, %v1818
      %1851 = vst.msk [vmem:[%s363 + $0x4c] sm:$0xf] %vm1575, %v1819
      %1852 = vst.msk [vmem:[%s363 + $0x50] sm:$0xf] %vm1575, %v1820
      %1853 = vst.msk [vmem:[%s363 + $0x54] sm:$0xf] %vm1575, %v1821
      %1854 = vst.msk [vmem:[%s363 + $0x58] sm:$0xf] %vm1575, %v1822
      %1855 = vst.msk [vmem:[%s363 + $0x5c] sm:$0xf] %vm1575, %v1823
      %1856 = vst.msk [vmem:[%s363 + $0x60] sm:$0xf] %vm1575, %v1824
      %1857 = vst.msk [vmem:[%s363 + $0x64] sm:$0xf] %vm1575, %v1825
      %1858 = vst.msk [vmem:[%s363 + $0x68] sm:$0xf] %vm1575, %v1826
      %1859 = vst.msk [vmem:[%s363 + $0x6c] sm:$0xf] %vm1575, %v1827
      %1860 = vst.msk [vmem:[%s363 + $0x70] sm:$0xf] %vm1575, %v1828
      %1861 = vst.msk [vmem:[%s363 + $0x74] sm:$0xf] %vm1575, %v1829
      %1862 = vst.msk [vmem:[%s363 + $0x78] sm:$0xf] %vm1575, %v1830
      %1863 = vst.msk [vmem:[%s363 + $0x7c] sm:$0xf] %vm1575, %v1831
      %s1864 = smul.u32 32, %s24
      %p1865 = scmp.lt.s32.totalorder %s23, 1
      %s1866 = scalar_select %p1865, %s23, 1
      %p1867 = scmp.lt.s32.totalorder %s1864, 31
      %s1868 = scalar_select %p1867, %s1864, 31
      %s1869 = smul.addr %s1866, 32
      %s1870 = sadd.s32 %s1868, %s1869
      %s1871 = smul.addr %s1870, 4
      %s1872 = scalar_lea.vmem %s5, %s1871
      %s1873 = smul.u32 32, %s24
      %p1874 = scmp.lt.s32.totalorder %s23, 1
      %s1875 = scalar_select %p1874, %s23, 1
      %p1876 = scmp.lt.s32.totalorder %s1873, 31
      %s1877 = scalar_select %p1876, %s1873, 31
      %s1878 = smul.addr %s1875, 32
      %s1879 = sadd.s32 %s1877, %s1878
      %s1880 = smul.addr %s1879, 4
      %s1881 = scalar_lea.vmem %s6, %s1880
      %s1882 = smul.u32 32, %s24
      %p1883 = scmp.lt.s32.totalorder %s23, 1
      %s1884 = scalar_select %p1883, %s23, 1
      %p1885 = scmp.lt.s32.totalorder %s1882, 31
      %s1886 = scalar_select %p1885, %s1882, 31
      %s1887 = smul.addr %s1884, 32
      %s1888 = sadd.s32 %s1886, %s1887
      %s1889 = smul.addr %s1888, 4
      %s1890 = scalar_lea.vmem %s7, %s1889
      // Predicated region
      $region41: #{tpu_custom_call.1} parent=39 // pred_check
        %p1891 = pneg %p163
      $region42: #{tpu_custom_call.1} parent=39 // pred_check_branch
        %1893 = sbr.rel (%p1891) target = $region44
      $region43: #{tpu_custom_call.1} parent=39 // pred_region
        %s1894 = smul.u32 32, %s24
      $region44: #{tpu_custom_call.1} parent=39 // pred_fallthru
        _
      // Predicated region
      $region45: #{tpu_custom_call.1} parent=39 // pred_check
        %p1895 = pneg %p191
      $region46: #{tpu_custom_call.1} parent=39 // pred_check_branch
        %1897 = sbr.rel (%p1895) target = $region48
      $region47: #{tpu_custom_call.1} parent=39 // pred_region
        %s1898 = smul.u32 32, %s24
      $region48: #{tpu_custom_call.1} parent=39 // pred_fallthru
        _
      // Predicated region
      $region49: #{tpu_custom_call.1} parent=39 // pred_check
        %p1899 = pneg %p219
      $region50: #{tpu_custom_call.1} parent=39 // pred_check_branch
        %1901 = sbr.rel (%p1899) target = $region52
      $region51: #{tpu_custom_call.1} parent=39 // pred_region
        %s1902 = smul.u32 32, %s24
      $region52: #{tpu_custom_call.1} parent=39 // pred_fallthru
        _
    $region40: #{tpu_custom_call.1} parent=5 // pred_fallthru
      _
    %p1903 = scmp.le.s32.totalorder 2, %s14
    // Predicated region
    $region53: #{tpu_custom_call.1} parent=5 // pred_check
      %p1904 = pneg %p1903
    $region54: #{tpu_custom_call.1} parent=5 // pred_check_branch
      %1906 = sbr.rel (%p1904) target = $region56
    $region55: #{tpu_custom_call.1} parent=5 // pred_region
      %s1907 = ssub.s32 %s14, 2
      // Predicated region
      $region57: #{tpu_custom_call.1} parent=55 // pred_check
        %p1908 = pneg %p169
      $region58: #{tpu_custom_call.1} parent=55 // pred_check_branch
        %1910 = sbr.rel (%p1908) target = $region60
      $region59: #{tpu_custom_call.1} parent=55 // pred_region
        %s1911 = smul.u32 32, %s26
        %p1912 = scmp.lt.s32.totalorder %s25, 1
        %s1913 = scalar_select %p1912, %s25, 1
        %p1914 = scmp.lt.s32.totalorder %s1911, 31
        %s1915 = scalar_select %p1914, %s1911, 31
        %s1916 = smul.addr %s1913, 32
        %s1917 = sadd.s32 %s1915, %s1916
        %s1918 = smul.addr %s1917, 4
        %s1919 = scalar_lea.vmem %s5, %s1918
      $region60: #{tpu_custom_call.1} parent=55 // pred_fallthru
        _
      // Predicated region
      $region61: #{tpu_custom_call.1} parent=55 // pred_check
        %p1920 = pneg %p197
      $region62: #{tpu_custom_call.1} parent=55 // pred_check_branch
        %1922 = sbr.rel (%p1920) target = $region64
      $region63: #{tpu_custom_call.1} parent=55 // pred_region
        %s1923 = smul.u32 32, %s26
        %p1924 = scmp.lt.s32.totalorder %s25, 1
        %s1925 = scalar_select %p1924, %s25, 1
        %p1926 = scmp.lt.s32.totalorder %s1923, 31
        %s1927 = scalar_select %p1926, %s1923, 31
        %s1928 = smul.addr %s1925, 32
        %s1929 = sadd.s32 %s1927, %s1928
        %s1930 = smul.addr %s1929, 4
        %s1931 = scalar_lea.vmem %s6, %s1930
      $region64: #{tpu_custom_call.1} parent=55 // pred_fallthru
        _
      // Predicated region
      $region65: #{tpu_custom_call.1} parent=55 // pred_check
        %p1932 = pneg %p225
      $region66: #{tpu_custom_call.1} parent=55 // pred_check_branch
        %1934 = sbr.rel (%p1932) target = $region68
      $region67: #{tpu_custom_call.1} parent=55 // pred_region
        %s1935 = smul.u32 32, %s26
        %p1936 = scmp.lt.s32.totalorder %s25, 1
        %s1937 = scalar_select %p1936, %s25, 1
        %p1938 = scmp.lt.s32.totalorder %s1935, 31
        %s1939 = scalar_select %p1938, %s1935, 31
        %s1940 = smul.addr %s1937, 32
        %s1941 = sadd.s32 %s1939, %s1940
        %s1942 = smul.addr %s1941, 4
        %s1943 = scalar_lea.vmem %s7, %s1942
      $region68: #{tpu_custom_call.1} parent=55 // pred_fallthru
        _
    $region56: #{tpu_custom_call.1} parent=5 // pred_fallthru
      _
  $region6: #{tpu_custom_call.1} parent=0 // loop_footer
    %s18 = sadd.s32 1, %s14
  $region7: #{tpu_custom_call.1} parent=0 // loop_footer_branch
    %13 = sbr.rel target = $region3
  $region8: #{tpu_custom_call.1} parent=0 // loop_exit
    _

</llo_original>
